<compile_context>
chip_gen: v7x
topology: tpu7x:2x2x1
jax: 0.10.0
libtpu: 0.0.40
codegen_flags: <defaults>
</compile_context>

<pallas_src>
import numpy as np
import jax
import jax.numpy as jnp
from jax.experimental import pallas as pl
from jax.experimental.pallas import tpu as pltpu

BINS = (1, 2, 3, 6)


# ----------------------------------------------------------------------------
# Static linear operators (shape-dependent only, exact PyTorch semantics)
# ----------------------------------------------------------------------------
def adaptive_pool_matrix(out_size: int, in_size: int) -> np.ndarray:
    """1-D AdaptiveAvgPool operator P with pooled = P @ x (PyTorch regions)."""
    P = np.zeros((out_size, in_size), np.float32)
    for i in range(out_size):
        start = (i * in_size) // out_size
        end = -((-(i + 1) * in_size) // out_size)  # ceil((i+1)*L/b)
        P[i, start:end] = 1.0 / (end - start)
    return P


def bilinear_matrix(out_size: int, in_size: int) -> np.ndarray:
    """1-D bilinear interpolation operator (align_corners=False), up = U @ y."""
    U = np.zeros((out_size, in_size), np.float32)
    scale = in_size / out_size
    for o in range(out_size):
        src = max(scale * (o + 0.5) - 0.5, 0.0)
        i0 = min(int(np.floor(src)), in_size - 1)
        i1 = min(i0 + 1, in_size - 1)
        frac = src - i0
        U[o, i0] += 1.0 - frac
        U[o, i1] += frac
    return U


def fold_conv_bn(conv_w, gamma, beta, mean, var, eps=1e-5):
    """1x1 conv (no bias) + BatchNorm(eval) -> (W_folded (Cin,Cout), bias (1,Cout))."""
    scale = gamma / jnp.sqrt(var + eps)
    w = (conv_w * scale[:, None]).T          # (C_in, C_out)
    bias = (beta - mean * scale)[None, :]    # (1, C_out)
    return w, bias


# ----------------------------------------------------------------------------
# Pallas kernels
# ----------------------------------------------------------------------------
def _make_pool_kernel(bins, c_in, c_red):
    """Pass 1: pooled accumulation over HW tiles + branch convs + z_cat."""
    offs = [0]
    for b in bins:
        offs.append(offs[-1] + b * b)

    def kernel(x_ref, m_ref, wb_ref, b_ref, wf_ref, y_ref, z_ref, acc_ref):
        t = pl.program_id(1)

        @pl.when(t == 0)
        def _init():
            acc_ref[...] = jnp.zeros_like(acc_ref)

        # partial adaptive-average-pool over this HW tile, as one matmul with
        # the concatenated (sum_bb, hw_tile) pooling operator
        acc_ref[...] += jnp.dot(m_ref[...], x_ref[0],
                                preferred_element_type=jnp.float32)

        @pl.when(t == pl.num_programs(1) - 1)
        def _finalize():
            pooled = acc_ref[...].astype(jnp.bfloat16)       # (sum_bb, C_in)
            wb = wb_ref[...]                                 # (n_bins*C_in, C_red)
            bias = b_ref[...]                                # (n_bins, C_red)
            wf = wf_ref[...]                                 # (n_bins*C_red, C_out)
            ys, zs = [], []
            for i, _b in enumerate(bins):
                p_i = pooled[offs[i]:offs[i + 1], :]
                w_i = wb[i * c_in:(i + 1) * c_in, :]
                # branch 1x1 Conv + folded BN + ReLU
                y_i = jnp.maximum(
                    jnp.dot(p_i, w_i, preferred_element_type=jnp.float32)
                    + bias[i:i + 1, :], 0.0)                 # (bb, C_red) f32
                ys.append(y_i)
                # fuse this branch's block of the final 1x1 conv here:
                #   acc += U @ (y @ Wf)  ==  (U @ y) @ Wf   (exact; ReLU done)
                f_i = wf[i * c_red:(i + 1) * c_red, :]
                zs.append(jnp.dot(y_i.astype(jnp.bfloat16), f_i,
                                  preferred_element_type=jnp.float32))
            y_ref[0] = jnp.concatenate(ys, axis=0).astype(y_ref.dtype)
            z_ref[0] = jnp.concatenate(zs, axis=0).astype(z_ref.dtype)

    return kernel


def _out_kernel(x_ref, u_ref, z_ref, wx_ref, bias_ref, out_ref):
    """Pass 2: per-pixel out = ReLU(x @ Wx + U_cat @ z_cat + bias)."""
    acc = jnp.dot(x_ref[0], wx_ref[...], preferred_element_type=jnp.float32)
    acc += jnp.dot(u_ref[...], z_ref[0].astype(jnp.bfloat16),
                   preferred_element_type=jnp.float32)
    out_ref[0] = jnp.maximum(acc + bias_ref[...], 0.0).astype(out_ref.dtype)


# ----------------------------------------------------------------------------
# Builder
# ----------------------------------------------------------------------------
def _pick_hw_tile(hw, requested=None):
    if requested is not None:
        assert hw % requested == 0 and (requested % 128 == 0 or requested == hw)
        return requested
    for cand in (2048, 1024, 512, 256, 128):
        if cand <= hw and hw % cand == 0:
            return cand
    return hw


def build_ppm(N, HW, C_in, C_red, C_out, bins, hw_tile=None,
              out_dtype=jnp.float32):
    n_bins = len(bins)
    sbb = sum(b * b for b in bins)
    hw_tile = _pick_hw_tile(HW, hw_tile)
    n_t = HW // hw_tile
    vmem_limit = 48 * 1024 * 1024  # above v5e/v6e scoped defaults, < v7x physical

    pool_call = pl.pallas_call(
        _make_pool_kernel(bins, C_in, C_red),
        grid=(N, n_t),
        in_specs=[
            pl.BlockSpec((1, hw_tile, C_in), lambda n, t: (n, t, 0)),     # x tile
            pl.BlockSpec((sbb, hw_tile), lambda n, t: (0, t)),            # M_cat tile
            pl.BlockSpec((n_bins * C_in, C_red), lambda n, t: (0, 0)),    # branch W
            pl.BlockSpec((n_bins, C_red), lambda n, t: (0, 0)),           # branch bias
            pl.BlockSpec((n_bins * C_red, C_out), lambda n, t: (0, 0)),   # final W (branch rows)
        ],
        out_specs=(
            pl.BlockSpec((1, sbb, C_red), lambda n, t: (n, 0, 0)),        # y_cat
            pl.BlockSpec((1, sbb, C_out), lambda n, t: (n, 0, 0)),        # z_cat
        ),
        out_shape=(
            jax.ShapeDtypeStruct((N, sbb, C_red), jnp.float32),
            jax.ShapeDtypeStruct((N, sbb, C_out), jnp.float32),
        ),
        scratch_shapes=[pltpu.VMEM((sbb, C_in), jnp.float32)],
        compiler_params=pltpu.CompilerParams(
            dimension_semantics=("parallel", "arbitrary"),
            vmem_limit_bytes=vmem_limit),
        cost_estimate=pl.CostEstimate(
            flops=2 * N * (HW * sbb * C_in + sbb * C_in * C_red
                           + sbb * C_red * C_out),
            transcendentals=0,
            bytes_accessed=2 * N * HW * C_in + 2 * sbb * HW
                           + 4 * N * sbb * (C_red + C_out)),
    )

    out_call = pl.pallas_call(
        _out_kernel,
        grid=(N, n_t),
        in_specs=[
            pl.BlockSpec((1, hw_tile, C_in), lambda n, t: (n, t, 0)),     # x tile
            pl.BlockSpec((hw_tile, sbb), lambda n, t: (t, 0)),            # U_cat tile
            pl.BlockSpec((1, sbb, C_out), lambda n, t: (n, 0, 0)),        # z_cat
            pl.BlockSpec((C_in, C_out), lambda n, t: (0, 0)),             # final W (x rows)
            pl.BlockSpec((1, C_out), lambda n, t: (0, 0)),                # final bias
        ],
        out_specs=pl.BlockSpec((1, hw_tile, C_out), lambda n, t: (n, t, 0)),
        out_shape=jax.ShapeDtypeStruct((N, HW, C_out), out_dtype),
        compiler_params=pltpu.CompilerParams(
            dimension_semantics=("parallel", "parallel"),
            vmem_limit_bytes=vmem_limit),
        cost_estimate=pl.CostEstimate(
            flops=2 * N * HW * (C_in * C_out + sbb * C_out),
            transcendentals=0,
            bytes_accessed=2 * N * HW * (C_in + 2 * C_out) + 2 * HW * sbb),
    )

    def ppm(x_bf, m_cat, u_cat, wb_all, b_all, wf_br, wx, bias_final):
        y_cat, z_cat = pool_call(x_bf, m_cat, wb_all, b_all, wf_br)
        out = out_call(x_bf, u_cat, z_cat, wx, bias_final)
        return out, y_cat

    return jax.jit(ppm)


# ----------------------------------------------------------------------------
# Pure-JAX reference (original, unfused formulation) for a sanity check
# ----------------------------------------------------------------------------
def reference(x, m_cat, u_cat, wb_all, b_all, wf_br, wx, bias_final,
              bins, c_in, c_red):
    offs = [0]
    for b in bins:
        offs.append(offs[-1] + b * b)
    acc = jnp.einsum('nlc,co->nlo', x, wx)
    pooled = jnp.einsum('pl,nlc->npc', m_cat, x)
    ys = []
    for i, _b in enumerate(bins):
        p = pooled[:, offs[i]:offs[i + 1], :]
        w = wb_all[i * c_in:(i + 1) * c_in]
        y = jnp.maximum(jnp.einsum('npc,cr->npr', p, w) + b_all[i], 0.0)
        ys.append(y)
        up = jnp.einsum('lp,npr->nlr', u_cat[:, offs[i]:offs[i + 1]], y)
        acc = acc + jnp.einsum('nlr,ro->nlo', up, wf_br[i * c_red:(i + 1) * c_red])
    return jnp.maximum(acc + bias_final, 0.0), ys


# ----------------------------------------------------------------------------
if __name__ == "__main__":
    N, C_in, H, W = 2, 16, 16, 16
    C_out = 8
    bins = BINS
    C_red = C_in // len(bins)
    HW = H * W
    C_total = C_in + C_red * len(bins)
    sbb = sum(b * b for b in bins)

    key = jax.random.PRNGKey(0)
    ks = list(jax.random.split(key, 64))
    it = iter(ks)
    nxt = lambda: next(it)

    # input (PyTorch NCHW) -> pixel-major channels-last
    x_nchw = jax.random.normal(nxt(), (N, C_in, H, W), jnp.float32)
    x_k = jnp.transpose(x_nchw, (0, 2, 3, 1)).reshape(N, HW, C_in)

    # per-branch ConvNormAct (1x1 conv, BN(eval), ReLU), folded
    branch_ws, branch_bs = [], []
    for _ in bins:
        cw = 0.1 * jax.random.normal(nxt(), (C_red, C_in), jnp.float32)
        gamma = 1.0 + 0.1 * jax.random.normal(nxt(), (C_red,), jnp.float32)
        beta = 0.05 * jax.random.normal(nxt(), (C_red,), jnp.float32)
        mean = 0.1 * jax.random.normal(nxt(), (C_red,), jnp.float32)
        var = 1.0 + 0.1 * jnp.abs(jax.random.normal(nxt(), (C_red,), jnp.float32))
        w, b = fold_conv_bn(cw, gamma, beta, mean, var)
        branch_ws.append(w)
        branch_bs.append(b)
    Wb_all = jnp.concatenate(branch_ws, axis=0)            # (n_bins*C_in, C_red)
    b_all = jnp.concatenate(branch_bs, axis=0)             # (n_bins, C_red)

    # final ConvNormAct over concatenated channels [x, y_bin1, ..., y_bin4]
    fw = 0.1 * jax.random.normal(nxt(), (C_out, C_total), jnp.float32)
    gamma = 1.0 + 0.1 * jax.random.normal(nxt(), (C_out,), jnp.float32)
    beta = 0.05 * jax.random.normal(nxt(), (C_out,), jnp.float32)
    mean = 0.1 * jax.random.normal(nxt(), (C_out,), jnp.float32)
    var = 1.0 + 0.1 * jnp.abs(jax.random.normal(nxt(), (C_out,), jnp.float32))
    Wfull, bias_final = fold_conv_bn(fw, gamma, beta, mean, var)
    Wx = Wfull[:C_in]                                       # (C_in, C_out)
    Wf_br = Wfull[C_in:]                                    # (n_bins*C_red, C_out)

    # concatenated pooling / upsampling operators (exact PyTorch semantics)
    m_blocks, u_blocks = [], []
    for b in bins:
        Ph = adaptive_pool_matrix(b, H)
        Pw = adaptive_pool_matrix(b, W)
        m_blocks.append(np.kron(Ph, Pw))                    # (b*b, H*W)
        Uh = bilinear_matrix(H, b)
        Uw = bilinear_matrix(W, b)
        u_blocks.append(np.kron(Uh, Uw))                    # (H*W, b*b)
    M_cat = jnp.asarray(np.concatenate(m_blocks, axis=0))   # (sum_bb, HW)
    U_cat = jnp.asarray(np.concatenate(u_blocks, axis=1))   # (HW, sum_bb)

    # bf16 operands, f32 biases/accumulation
    bf16 = jnp.bfloat16
    x_bf = x_k.astype(bf16)
    M_bf = M_cat.astype(bf16)
    U_bf = U_cat.astype(bf16)
    Wb_bf = Wb_all.astype(bf16)
    Wf_bf = Wf_br.astype(bf16)
    Wx_bf = Wx.astype(bf16)

    ppm = build_ppm(N, HW, C_in, C_red, C_out, bins, hw_tile=128)
    out_k, y_cat = ppm(x_bf, M_bf, U_bf, Wb_bf, b_all, Wf_bf, Wx_bf, bias_final)
    out_k, y_cat = jax.block_until_ready((out_k, y_cat))

    # sanity check against a pure-JAX f32 reference on the same (bf16-rounded)
    # operands, using the original unfused formulation
    f32 = jnp.float32
    out_ref, ys_ref = reference(
        x_bf.astype(f32), M_bf.astype(f32), U_bf.astype(f32),
        Wb_bf.astype(f32), b_all, Wf_bf.astype(f32), Wx_bf.astype(f32),
        bias_final, bins, C_in, C_red)

    assert np.allclose(np.asarray(out_k, np.float32), np.asarray(out_ref),
                       rtol=2e-2, atol=2e-2)
    offs = [0]
    for b in bins:
        offs.append(offs[-1] + b * b)
    for i, b in enumerate(bins):
        yk = np.asarray(y_cat[:, offs[i]:offs[i + 1], :], np.float32)
        yr = np.asarray(ys_ref[i])
        assert np.allclose(yk, yr, rtol=2e-2, atol=2e-2)

    # convert back to PyTorch NCHW layout: (out, tuple(features_context))
    out_nchw = jnp.transpose(out_k.reshape(N, H, W, C_out), (0, 3, 1, 2))
    features_context = tuple(
        jnp.transpose(y_cat[:, offs[i]:offs[i + 1], :].reshape(N, b, b, C_red),
                      (0, 3, 1, 2))
        for i, b in enumerate(bins)
    )
    assert out_nchw.shape == (N, C_out, H, W)
    assert all(f.shape == (N, C_red, b, b)
               for f, b in zip(features_context, bins))

    print("KERNEL_OK")
</pallas_src>

<mosaic_0001>
module attributes {stable_mosaic.version = 11 : i64} {
  func.func @_out_kernel(%arg0: i32, %arg1: i32, %arg2: memref<1x128x16xbf16, #tpu.memory_space<vmem>>, %arg3: memref<128x50xbf16, #tpu.memory_space<vmem>>, %arg4: memref<1x50x8xf32, #tpu.memory_space<vmem>>, %arg5: memref<16x8xbf16, #tpu.memory_space<vmem>>, %arg6: memref<1x8xf32, #tpu.memory_space<vmem>>, %arg7: memref<1x128x8xf32, #tpu.memory_space<vmem>>) attributes {dimension_semantics = [#tpu.dimension_semantics<parallel>, #tpu.dimension_semantics<parallel>], iteration_bounds = array<i64: 2, 2>, scalar_prefetch = 0 : i64, scratch_operands = 0 : i64, tpu.core_type = #tpu.core_type<tc>, window_params = [{transform_indices = @transform_0, window_bounds = array<i64: 1, 128, 16>}, {transform_indices = @transform_1, window_bounds = array<i64: 128, 50>}, {transform_indices = @transform_2, window_bounds = array<i64: 1, 50, 8>}, {pipeline_mode = #tpu.pipeline_mode<synchronous>, transform_indices = @transform_3, window_bounds = array<i64: 16, 8>}, {pipeline_mode = #tpu.pipeline_mode<synchronous>, transform_indices = @transform_4, window_bounds = array<i64: 1, 8>}, {transform_indices = @transform_5, window_bounds = array<i64: 1, 128, 8>}]} {
    %c0 = arith.constant 0 : index
    %c0_0 = arith.constant 0 : index
    %c0_1 = arith.constant 0 : index
    %0 = vector.load %arg2[%c0, %c0_0, %c0_1] : memref<1x128x16xbf16, #tpu.memory_space<vmem>>, vector<1x128x16xbf16>
    %1 = vector.shape_cast %0 : vector<1x128x16xbf16> to vector<128x16xbf16>
    %c0_2 = arith.constant 0 : index
    %c0_3 = arith.constant 0 : index
    %2 = vector.load %arg5[%c0_2, %c0_3] : memref<16x8xbf16, #tpu.memory_space<vmem>>, vector<16x8xbf16>
    %cst = arith.constant dense<0.000000e+00> : vector<128x8xf32>
    %3 = tpu.matmul %1, %2, %cst {dimension_numbers = #tpu.dot_dimension_numbers<[1], [0], [0], [1], [0, 0, 1, 1], [], []>} : vector<128x16xbf16>, vector<16x8xbf16>, vector<128x8xf32> -> vector<128x8xf32>
    %c0_4 = arith.constant 0 : index
    %c0_5 = arith.constant 0 : index
    %4 = vector.load %arg3[%c0_4, %c0_5] : memref<128x50xbf16, #tpu.memory_space<vmem>>, vector<128x50xbf16>
    %c0_6 = arith.constant 0 : index
    %c0_7 = arith.constant 0 : index
    %c0_8 = arith.constant 0 : index
    %5 = vector.load %arg4[%c0_6, %c0_7, %c0_8] : memref<1x50x8xf32, #tpu.memory_space<vmem>>, vector<1x50x8xf32>
    %6 = vector.shape_cast %5 : vector<1x50x8xf32> to vector<50x8xf32>
    %7 = arith.truncf %6 : vector<50x8xf32> to vector<50x8xbf16>
    %cst_9 = arith.constant dense<0.000000e+00> : vector<128x8xf32>
    %8 = tpu.matmul %4, %7, %cst_9 {dimension_numbers = #tpu.dot_dimension_numbers<[1], [0], [0], [1], [0, 0, 1, 1], [], []>} : vector<128x50xbf16>, vector<50x8xbf16>, vector<128x8xf32> -> vector<128x8xf32>
    %9 = arith.addf %3, %8 : vector<128x8xf32>
    %c0_10 = arith.constant 0 : index
    %c0_11 = arith.constant 0 : index
    %10 = vector.load %arg6[%c0_10, %c0_11] : memref<1x8xf32, #tpu.memory_space<vmem>>, vector<1x8xf32>
    %11 = vector.broadcast %10 : vector<1x8xf32> to vector<128x8xf32>
    %12 = arith.addf %9, %11 : vector<128x8xf32>
    %cst_12 = arith.constant 0.000000e+00 : f32
    %13 = vector.broadcast %cst_12 : f32 to vector<128x8xf32>
    %14 = arith.maximumf %12, %13 : vector<128x8xf32>
    %c0_13 = arith.constant 0 : index
    %c0_14 = arith.constant 0 : index
    %c0_15 = arith.constant 0 : index
    %15 = vector.load %arg7[%c0_13, %c0_14, %c0_15] : memref<1x128x8xf32, #tpu.memory_space<vmem>>, vector<1x128x8xf32>
    %16 = vector.shape_cast %15 : vector<1x128x8xf32> to vector<128x8xf32>
    %17 = vector.shape_cast %14 : vector<128x8xf32> to vector<1x128x8xf32>
    tpu.vector_store %arg7[%c0_13, %c0_14, %c0_15], %17 {strides = array<i32>} : memref<1x128x8xf32, #tpu.memory_space<vmem>>, vector<1x128x8xf32>,
    return
  }
  func.func @transform_0(%arg0: i32, %arg1: i32) -> (i32, i32, i32) {
    %c0_i32 = arith.constant 0 : i32
    %c0_i32_0 = arith.constant 0 : i32
    return %arg0, %arg1, %c0_i32 : i32, i32, i32
  }
  func.func @transform_1(%arg0: i32, %arg1: i32) -> (i32, i32) {
    %c0_i32 = arith.constant 0 : i32
    %c0_i32_0 = arith.constant 0 : i32
    return %arg1, %c0_i32 : i32, i32
  }
  func.func @transform_2(%arg0: i32, %arg1: i32) -> (i32, i32, i32) {
    %c0_i32 = arith.constant 0 : i32
    %c0_i32_0 = arith.constant 0 : i32
    %c0_i32_1 = arith.constant 0 : i32
    return %arg0, %c0_i32, %c0_i32_0 : i32, i32, i32
  }
  func.func @transform_3(%arg0: i32, %arg1: i32) -> (i32, i32) {
    %c0_i32 = arith.constant 0 : i32
    %c0_i32_0 = arith.constant 0 : i32
    %c0_i32_1 = arith.constant 0 : i32
    return %c0_i32, %c0_i32_0 : i32, i32
  }
  func.func @transform_4(%arg0: i32, %arg1: i32) -> (i32, i32) {
    %c0_i32 = arith.constant 0 : i32
    %c0_i32_0 = arith.constant 0 : i32
    %c0_i32_1 = arith.constant 0 : i32
    return %c0_i32, %c0_i32_0 : i32, i32
  }
  func.func @transform_5(%arg0: i32, %arg1: i32) -> (i32, i32, i32) {
    %c0_i32 = arith.constant 0 : i32
    %c0_i32_0 = arith.constant 0 : i32
    return %arg0, %arg1, %c0_i32 : i32, i32, i32
  }
}

module attributes {stable_mosaic.version = 11 : i64} {
  func.func @kernel(%arg0: i32, %arg1: i32, %arg2: memref<1x128x16xbf16, #tpu.memory_space<vmem>>, %arg3: memref<50x128xbf16, #tpu.memory_space<vmem>>, %arg4: memref<64x4xbf16, #tpu.memory_space<vmem>>, %arg5: memref<4x4xf32, #tpu.memory_space<vmem>>, %arg6: memref<16x8xbf16, #tpu.memory_space<vmem>>, %arg7: memref<1x50x4xf32, #tpu.memory_space<vmem>>, %arg8: memref<1x50x8xf32, #tpu.memory_space<vmem>>, %arg9: memref<50x16xf32, #tpu.memory_space<vmem>>) attributes {dimension_semantics = [#tpu.dimension_semantics<parallel>, #tpu.dimension_semantics<arbitrary>], iteration_bounds = array<i64: 2, 2>, scalar_prefetch = 0 : i64, scratch_operands = 1 : i64, tpu.core_type = #tpu.core_type<tc>, window_params = [{transform_indices = @transform_0, window_bounds = array<i64: 1, 128, 16>}, {transform_indices = @transform_1, window_bounds = array<i64: 50, 128>}, {pipeline_mode = #tpu.pipeline_mode<synchronous>, transform_indices = @transform_2, window_bounds = array<i64: 64, 4>}, {pipeline_mode = #tpu.pipeline_mode<synchronous>, transform_indices = @transform_3, window_bounds = array<i64: 4, 4>}, {pipeline_mode = #tpu.pipeline_mode<synchronous>, transform_indices = @transform_4, window_bounds = array<i64: 16, 8>}, {transform_indices = @transform_5, window_bounds = array<i64: 1, 50, 4>}, {transform_indices = @transform_6, window_bounds = array<i64: 1, 50, 8>}]} {
    %c0_i32 = arith.constant 0 : i32
    %0 = arith.cmpi eq, %arg1, %c0_i32 : i32
    %1 = arith.extui %0 : i1 to i32
    %c0_i32_0 = arith.constant 0 : i32
    %2 = arith.cmpi ne, %1, %c0_i32_0 : i32
    scf.if %2 {
      %cst_10 = arith.constant 0.000000e+00 : f32
      %13 = vector.broadcast %cst_10 : f32 to vector<50x16xf32>
      %c0_11 = arith.constant 0 : index
      %c0_12 = arith.constant 0 : index
      %14 = vector.load %arg9[%c0_11, %c0_12] : memref<50x16xf32, #tpu.memory_space<vmem>>, vector<50x16xf32>
      tpu.vector_store %arg9[%c0_11, %c0_12], %13 {strides = array<i32>} : memref<50x16xf32, #tpu.memory_space<vmem>>, vector<50x16xf32>,
    } else {
    }
    %c0 = arith.constant 0 : index
    %c0_1 = arith.constant 0 : index
    %3 = vector.load %arg9[%c0, %c0_1] : memref<50x16xf32, #tpu.memory_space<vmem>>, vector<50x16xf32>
    %c0_2 = arith.constant 0 : index
    %c0_3 = arith.constant 0 : index
    %4 = vector.load %arg3[%c0_2, %c0_3] : memref<50x128xbf16, #tpu.memory_space<vmem>>, vector<50x128xbf16>
    %c0_4 = arith.constant 0 : index
    %c0_5 = arith.constant 0 : index
    %c0_6 = arith.constant 0 : index
    %5 = vector.load %arg2[%c0_4, %c0_5, %c0_6] : memref<1x128x16xbf16, #tpu.memory_space<vmem>>, vector<1x128x16xbf16>
    %6 = vector.shape_cast %5 : vector<1x128x16xbf16> to vector<128x16xbf16>
    %cst = arith.constant dense<0.000000e+00> : vector<50x16xf32>
    %7 = tpu.matmul %4, %6, %cst {dimension_numbers = #tpu.dot_dimension_numbers<[1], [0], [0], [1], [0, 0, 1, 1], [], []>} : vector<50x128xbf16>, vector<128x16xbf16>, vector<50x16xf32> -> vector<50x16xf32>
    %8 = arith.addf %3, %7 : vector<50x16xf32>
    %c0_7 = arith.constant 0 : index
    %c0_8 = arith.constant 0 : index
    %9 = vector.load %arg9[%c0_7, %c0_8] : memref<50x16xf32, #tpu.memory_space<vmem>>, vector<50x16xf32>
    tpu.vector_store %arg9[%c0_7, %c0_8], %8 {strides = array<i32>} : memref<50x16xf32, #tpu.memory_space<vmem>>, vector<50x16xf32>,
    %c1_i32 = arith.constant 1 : i32
    %10 = arith.cmpi eq, %arg1, %c1_i32 : i32
    %11 = arith.extui %10 : i1 to i32
    %c0_i32_9 = arith.constant 0 : i32
    %12 = arith.cmpi ne, %11, %c0_i32_9 : i32
    scf.if %12 {
      %c0_10 = arith.constant 0 : index
      %c0_11 = arith.constant 0 : index
      %13 = vector.load %arg9[%c0_10, %c0_11] : memref<50x16xf32, #tpu.memory_space<vmem>>, vector<50x16xf32>
      %14 = arith.truncf %13 : vector<50x16xf32> to vector<50x16xbf16>
      %c0_12 = arith.constant 0 : index
      %c0_13 = arith.constant 0 : index
      %15 = vector.load %arg4[%c0_12, %c0_13] : memref<64x4xbf16, #tpu.memory_space<vmem>>, vector<64x4xbf16>
      %c0_14 = arith.constant 0 : index
      %c0_15 = arith.constant 0 : index
      %16 = vector.load %arg5[%c0_14, %c0_15] : memref<4x4xf32, #tpu.memory_space<vmem>>, vector<4x4xf32>
      %c0_16 = arith.constant 0 : index
      %c0_17 = arith.constant 0 : index
      %17 = vector.load %arg6[%c0_16, %c0_17] : memref<16x8xbf16, #tpu.memory_space<vmem>>, vector<16x8xbf16>
      %18 = vector.extract_strided_slice %14 {offsets = [0, 0], sizes = [1, 16], strides = [1, 1]} : vector<50x16xbf16> to vector<1x16xbf16>
      %19 = vector.extract_strided_slice %15 {offsets = [0, 0], sizes = [16, 4], strides = [1, 1]} : vector<64x4xbf16> to vector<16x4xbf16>
      %cst_18 = arith.constant dense<0.000000e+00> : vector<1x4xf32>
      %20 = tpu.matmul %18, %19, %cst_18 {dimension_numbers = #tpu.dot_dimension_numbers<[1], [0], [0], [1], [0, 0, 1, 1], [], []>} : vector<1x16xbf16>, vector<16x4xbf16>, vector<1x4xf32> -> vector<1x4xf32>
      %21 = vector.extract_strided_slice %16 {offsets = [0, 0], sizes = [1, 4], strides = [1, 1]} : vector<4x4xf32> to vector<1x4xf32>
      %22 = arith.addf %20, %21 : vector<1x4xf32>
      %cst_19 = arith.constant 0.000000e+00 : f32
      %23 = vector.broadcast %cst_19 : f32 to vector<1x4xf32>
      %24 = arith.maximumf %22, %23 : vector<1x4xf32>
      %25 = vector.extract_strided_slice %17 {offsets = [0, 0], sizes = [4, 8], strides = [1, 1]} : vector<16x8xbf16> to vector<4x8xbf16>
      %26 = arith.truncf %24 : vector<1x4xf32> to vector<1x4xbf16>
      %cst_20 = arith.constant dense<0.000000e+00> : vector<1x8xf32>
      %27 = tpu.matmul %26, %25, %cst_20 {dimension_numbers = #tpu.dot_dimension_numbers<[1], [0], [0], [1], [0, 0, 1, 1], [], []>} : vector<1x4xbf16>, vector<4x8xbf16>, vector<1x8xf32> -> vector<1x8xf32>
      %28 = vector.extract_strided_slice %14 {offsets = [1, 0], sizes = [4, 16], strides = [1, 1]} : vector<50x16xbf16> to vector<4x16xbf16>
      %29 = vector.extract_strided_slice %15 {offsets = [16, 0], sizes = [16, 4], strides = [1, 1]} : vector<64x4xbf16> to vector<16x4xbf16>
      %cst_21 = arith.constant dense<0.000000e+00> : vector<4x4xf32>
      %30 = tpu.matmul %28, %29, %cst_21 {dimension_numbers = #tpu.dot_dimension_numbers<[1], [0], [0], [1], [0, 0, 1, 1], [], []>} : vector<4x16xbf16>, vector<16x4xbf16>, vector<4x4xf32> -> vector<4x4xf32>
      %31 = vector.extract_strided_slice %16 {offsets = [1, 0], sizes = [1, 4], strides = [1, 1]} : vector<4x4xf32> to vector<1x4xf32>
      %32 = vector.broadcast %31 : vector<1x4xf32> to vector<4x4xf32>
      %33 = arith.addf %30, %32 : vector<4x4xf32>
      %cst_22 = arith.constant 0.000000e+00 : f32
      %34 = vector.broadcast %cst_22 : f32 to vector<4x4xf32>
      %35 = arith.maximumf %33, %34 : vector<4x4xf32>
      %36 = vector.extract_strided_slice %17 {offsets = [4, 0], sizes = [4, 8], strides = [1, 1]} : vector<16x8xbf16> to vector<4x8xbf16>
      %37 = arith.truncf %35 : vector<4x4xf32> to vector<4x4xbf16>
      %cst_23 = arith.constant dense<0.000000e+00> : vector<4x8xf32>
      %38 = tpu.matmul %37, %36, %cst_23 {dimension_numbers = #tpu.dot_dimension_numbers<[1], [0], [0], [1], [0, 0, 1, 1], [], []>} : vector<4x4xbf16>, vector<4x8xbf16>, vector<4x8xf32> -> vector<4x8xf32>
      %39 = vector.extract_strided_slice %14 {offsets = [5, 0], sizes = [9, 16], strides = [1, 1]} : vector<50x16xbf16> to vector<9x16xbf16>
      %40 = vector.extract_strided_slice %15 {offsets = [32, 0], sizes = [16, 4], strides = [1, 1]} : vector<64x4xbf16> to vector<16x4xbf16>
      %cst_24 = arith.constant dense<0.000000e+00> : vector<9x4xf32>
      %41 = tpu.matmul %39, %40, %cst_24 {dimension_numbers = #tpu.dot_dimension_numbers<[1], [0], [0], [1], [0, 0, 1, 1], [], []>} : vector<9x16xbf16>, vector<16x4xbf16>, vector<9x4xf32> -> vector<9x4xf32>
      %42 = vector.extract_strided_slice %16 {offsets = [2, 0], sizes = [1, 4], strides = [1, 1]} : vector<4x4xf32> to vector<1x4xf32>
      %43 = vector.broadcast %42 : vector<1x4xf32> to vector<9x4xf32>
      %44 = arith.addf %41, %43 : vector<9x4xf32>
      %cst_25 = arith.constant 0.000000e+00 : f32
      %45 = vector.broadcast %cst_25 : f32 to vector<9x4xf32>
      %46 = arith.maximumf %44, %45 : vector<9x4xf32>
      %47 = vector.extract_strided_slice %17 {offsets = [8, 0], sizes = [4, 8], strides = [1, 1]} : vector<16x8xbf16> to vector<4x8xbf16>
      %48 = arith.truncf %46 : vector<9x4xf32> to vector<9x4xbf16>
      %cst_26 = arith.constant dense<0.000000e+00> : vector<9x8xf32>
      %49 = tpu.matmul %48, %47, %cst_26 {dimension_numbers = #tpu.dot_dimension_numbers<[1], [0], [0], [1], [0, 0, 1, 1], [], []>} : vector<9x4xbf16>, vector<4x8xbf16>, vector<9x8xf32> -> vector<9x8xf32>
      %50 = vector.extract_strided_slice %14 {offsets = [14, 0], sizes = [36, 16], strides = [1, 1]} : vector<50x16xbf16> to vector<36x16xbf16>
      %51 = vector.extract_strided_slice %15 {offsets = [48, 0], sizes = [16, 4], strides = [1, 1]} : vector<64x4xbf16> to vector<16x4xbf16>
      %cst_27 = arith.constant dense<0.000000e+00> : vector<36x4xf32>
      %52 = tpu.matmul %50, %51, %cst_27 {dimension_numbers = #tpu.dot_dimension_numbers<[1], [0], [0], [1], [0, 0, 1, 1], [], []>} : vector<36x16xbf16>, vector<16x4xbf16>, vector<36x4xf32> -> vector<36x4xf32>
      %53 = vector.extract_strided_slice %16 {offsets = [3, 0], sizes = [1, 4], strides = [1, 1]} : vector<4x4xf32> to vector<1x4xf32>
      %54 = vector.broadcast %53 : vector<1x4xf32> to vector<36x4xf32>
      %55 = arith.addf %52, %54 : vector<36x4xf32>
      %cst_28 = arith.constant 0.000000e+00 : f32
      %56 = vector.broadcast %cst_28 : f32 to vector<36x4xf32>
      %57 = arith.maximumf %55, %56 : vector<36x4xf32>
      %58 = vector.extract_strided_slice %17 {offsets = [12, 0], sizes = [4, 8], strides = [1, 1]} : vector<16x8xbf16> to vector<4x8xbf16>
      %59 = arith.truncf %57 : vector<36x4xf32> to vector<36x4xbf16>
      %cst_29 = arith.constant dense<0.000000e+00> : vector<36x8xf32>
      %60 = tpu.matmul %59, %58, %cst_29 {dimension_numbers = #tpu.dot_dimension_numbers<[1], [0], [0], [1], [0, 0, 1, 1], [], []>} : vector<36x4xbf16>, vector<4x8xbf16>, vector<36x8xf32> -> vector<36x8xf32>
      %61 = tpu.concatenate %24, %35, %46, %57 in 0 : vector<1x4xf32>, vector<4x4xf32>, vector<9x4xf32>, vector<36x4xf32> -> vector<50x4xf32>
      %c0_30 = arith.constant 0 : index
      %c0_31 = arith.constant 0 : index
      %c0_32 = arith.constant 0 : index
      %62 = vector.load %arg7[%c0_30, %c0_31, %c0_32] : memref<1x50x4xf32, #tpu.memory_space<vmem>>, vector<1x50x4xf32>
      %63 = vector.shape_cast %62 : vector<1x50x4xf32> to vector<50x4xf32>
      %64 = vector.shape_cast %61 : vector<50x4xf32> to vector<1x50x4xf32>
      tpu.vector_store %arg7[%c0_30, %c0_31, %c0_32], %64 {strides = array<i32>} : memref<1x50x4xf32, #tpu.memory_space<vmem>>, vector<1x50x4xf32>,
      %65 = tpu.concatenate %27, %38, %49, %60 in 0 : vector<1x8xf32>, vector<4x8xf32>, vector<9x8xf32>, vector<36x8xf32> -> vector<50x8xf32>
      %c0_33 = arith.constant 0 : index
      %c0_34 = arith.constant 0 : index
      %c0_35 = arith.constant 0 : index
      %66 = vector.load %arg8[%c0_33, %c0_34, %c0_35] : memref<1x50x8xf32, #tpu.memory_space<vmem>>, vector<1x50x8xf32>
      %67 = vector.shape_cast %66 : vector<1x50x8xf32> to vector<50x8xf32>
      %68 = vector.shape_cast %65 : vector<50x8xf32> to vector<1x50x8xf32>
      tpu.vector_store %arg8[%c0_33, %c0_34, %c0_35], %68 {strides = array<i32>} : memref<1x50x8xf32, #tpu.memory_space<vmem>>, vector<1x50x8xf32>,
    } else {
    }
    return
  }
  func.func @transform_0(%arg0: i32, %arg1: i32) -> (i32, i32, i32) {
    %c0_i32 = arith.constant 0 : i32
    %c0_i32_0 = arith.constant 0 : i32
    return %arg0, %arg1, %c0_i32 : i32, i32, i32
  }
  func.func @transform_1(%arg0: i32, %arg1: i32) -> (i32, i32) {
    %c0_i32 = arith.constant 0 : i32
    %c0_i32_0 = arith.constant 0 : i32
    return %c0_i32, %arg1 : i32, i32
  }
  func.func @transform_2(%arg0: i32, %arg1: i32) -> (i32, i32) {
    %c0_i32 = arith.constant 0 : i32
    %c0_i32_0 = arith.constant 0 : i32
    %c0_i32_1 = arith.constant 0 : i32
    return %c0_i32, %c0_i32_0 : i32, i32
  }
  func.func @transform_3(%arg0: i32, %arg1: i32) -> (i32, i32) {
    %c0_i32 = arith.constant 0 : i32
    %c0_i32_0 = arith.constant 0 : i32
    %c0_i32_1 = arith.constant 0 : i32
    return %c0_i32, %c0_i32_0 : i32, i32
  }
  func.func @transform_4(%arg0: i32, %arg1: i32) -> (i32, i32) {
    %c0_i32 = arith.constant 0 : i32
    %c0_i32_0 = arith.constant 0 : i32
    %c0_i32_1 = arith.constant 0 : i32
    return %c0_i32, %c0_i32_0 : i32, i32
  }
  func.func @transform_5(%arg0: i32, %arg1: i32) -> (i32, i32, i32) {
    %c0_i32 = arith.constant 0 : i32
    %c0_i32_0 = arith.constant 0 : i32
    %c0_i32_1 = arith.constant 0 : i32
    return %arg0, %c0_i32, %c0_i32_0 : i32, i32, i32
  }
  func.func @transform_6(%arg0: i32, %arg1: i32) -> (i32, i32, i32) {
    %c0_i32 = arith.constant 0 : i32
    %c0_i32_0 = arith.constant 0 : i32
    %c0_i32_1 = arith.constant 0 : i32
    return %arg0, %c0_i32, %c0_i32_0 : i32, i32, i32
  }
}

</mosaic_0001>

<llo_original>
// kernel: ppm.3
$region0: #{ppm.3}
  #allocation0 [shape = 'u32[]', space=smem, size = 0x4, offset = 0x4, fixed_abs, tag = 'smem constant byte address 0x4 - core index']
  #allocation1 [shape = 'u32[144,128]{1,0:T(1,128)}', space=vmem, size = 0x12000, scoped, tag = 'internal scratch']
  %s0 = inlined_call_operand.vmem [shape: bf16[2,256,16], index: 0, kind: input, shape index: {}]
  %s1 = inlined_call_operand.vmem [shape: bf16[256,50], index: 1, kind: input, shape index: {}]
  %s2 = inlined_call_operand.vmem [shape: f32[2,50,8], index: 2, kind: input, shape index: {}]
  %s3 = inlined_call_operand.vmem [shape: bf16[16,8], index: 3, kind: input, shape index: {}]
  %s4 = inlined_call_operand.vmem [shape: f32[1,8], index: 4, kind: input, shape index: {}]
  %s5 = inlined_call_operand.vmem [shape: f32[2,256,8], index: 5, kind: output, shape index: {}]
  %s6 = sld [smem:[#allocation0]]
  $region53: #{ppm.3} parent=0
    _
  %s8 = ssub.s32 1, %s6
  %s9 = scalar_select 0, %s8, %s6
  loop: start=0, step=1, limit=6
  $region2: #{ppm.3} parent=0 // loop_pre_header
    _
  $region3: #{ppm.3} parent=0 // loop_header
    %s11 = sphi 0, %s15
    %p12 = scmp.ge.s32.totalorder %s11, 6
    %s18 = sphi 0, %s30
    %s19 = sphi 0, %s26
    %s20 = sphi 0, %s18
    %s21 = sphi 0, %s19
    %s22 = sphi 0, %s20
    %s23 = sphi 0, %s21
    %s35 = sphi 0, %s37
    %s38 = sphi 0, %s35
    %s39 = sphi 0, %s38
    %s55 = sphi 0, %s39
    %s61 = sphi 0, %s63
    %s64 = sphi 0, %s61
    %s65 = sphi 0, %s64
    %s81 = sphi 0, %s65
    %s87 = sphi 0, %s89
    %s90 = sphi 0, %s87
    %s91 = sphi 0, %s90
    %s107 = sphi 0, %s91
    %s111 = sphi 0, %s111
    %s113 = sphi 0, %s111
    %s114 = sphi 0, %s113
    %s128 = sphi 0, %s114
    %s132 = sphi 0, %s132
    %s134 = sphi 0, %s132
    %s135 = sphi 0, %s134
    %s149 = sphi 0, %s135
    %s157 = sphi 0, %s159
    %s160 = sphi 0, %s157
    %s161 = sphi 0, %s160
    %s177 = sphi 0, %s161
  $region4: #{ppm.3} parent=0 // loop_header_branch
    %14 = sbr.rel (%p12) target = $region8
  $region5: #{ppm.3} parent=0 // loop_body
    %s16 = ssub.s32 %s11, 1
    %s17 = ssub.s32 %s11, 2
    %s24 = sadd.s32 1, %s19
    %p25 = scmp.ge.s32.totalorder %s24, 2
    %s26 = scalar_select %p25, 0, %s24
    %s27 = sadd.s32 1, %s18
    %s28 = scalar_select %p25, %s27, %s18
    %p29 = scmp.ge.s32.totalorder %s28, 2
    %s30 = scalar_select %p29, 0, %s28
    %s31 = ssub.s32 %s18, %s30
    %s32 = ssub.s32 %s19, %s26
    %s33 = sor.u32 %s31, %s32
    %p34 = scmp.eq.s32.totalorder %s33, 0
    %s36 = sadd.s32 %s35, 1
    %s37 = scalar_select %p34, %s35, %s36
    %p40 = pneg %p34
    %p41 = scmp.eq.s32.totalorder %s11, 3
    %p42 = por %p40, %p41
    %p43 = scmp.ne.s32.totalorder %s35, %s38
    %p44 = scmp.eq.s32.totalorder %s11, 0
    %p45 = por %p43, %p44
    %p46 = scmp.ne.s32.totalorder %s35, %s38
    %p47 = scmp.eq.s32.totalorder %s16, 3
    %p48 = por %p46, %p47
    %p49 = scmp.ne.s32.totalorder %s38, %s39
    %p50 = scmp.eq.s32.totalorder %s16, 0
    %p51 = por %p49, %p50
    %p52 = scmp.ne.s32.totalorder %s38, %s39
    %p53 = scmp.eq.s32.totalorder %s17, 3
    %p54 = por %p52, %p53
    %p56 = scmp.ne.s32.totalorder %s39, %s55
    %p57 = scmp.eq.s32.totalorder %s17, 0
    %p58 = por %p56, %p57
    %s59 = ssub.s32 %s19, %s26
    %p60 = scmp.eq.s32.totalorder %s59, 0
    %s62 = sadd.s32 %s61, 1
    %s63 = scalar_select %p60, %s61, %s62
    %p66 = pneg %p60
    %p67 = scmp.eq.s32.totalorder %s11, 3
    %p68 = por %p66, %p67
    %p69 = scmp.ne.s32.totalorder %s61, %s64
    %p70 = scmp.eq.s32.totalorder %s11, 0
    %p71 = por %p69, %p70
    %p72 = scmp.ne.s32.totalorder %s61, %s64
    %p73 = scmp.eq.s32.totalorder %s16, 3
    %p74 = por %p72, %p73
    %p75 = scmp.ne.s32.totalorder %s64, %s65
    %p76 = scmp.eq.s32.totalorder %s16, 0
    %p77 = por %p75, %p76
    %p78 = scmp.ne.s32.totalorder %s64, %s65
    %p79 = scmp.eq.s32.totalorder %s17, 3
    %p80 = por %p78, %p79
    %p82 = scmp.ne.s32.totalorder %s65, %s81
    %p83 = scmp.eq.s32.totalorder %s17, 0
    %p84 = por %p82, %p83
    %s85 = ssub.s32 %s18, %s30
    %p86 = scmp.eq.s32.totalorder %s85, 0
    %s88 = sadd.s32 %s87, 1
    %s89 = scalar_select %p86, %s87, %s88
    %p92 = pneg %p86
    %p93 = scmp.eq.s32.totalorder %s11, 3
    %p94 = por %p92, %p93
    %p95 = scmp.ne.s32.totalorder %s87, %s90
    %p96 = scmp.eq.s32.totalorder %s11, 0
    %p97 = por %p95, %p96
    %p98 = scmp.ne.s32.totalorder %s87, %s90
    %p99 = scmp.eq.s32.totalorder %s16, 3
    %p100 = por %p98, %p99
    %p101 = scmp.ne.s32.totalorder %s90, %s91
    %p102 = scmp.eq.s32.totalorder %s16, 0
    %p103 = por %p101, %p102
    %p104 = scmp.ne.s32.totalorder %s90, %s91
    %p105 = scmp.eq.s32.totalorder %s17, 3
    %p106 = por %p104, %p105
    %p108 = scmp.ne.s32.totalorder %s91, %s107
    %p109 = scmp.eq.s32.totalorder %s17, 0
    %p110 = por %p108, %p109
    %s112 = sadd.s32 %s111, 1
    %p115 = scmp.eq.s32.totalorder %s11, 3
    %p116 = scmp.ne.s32.totalorder %s111, %s113
    %p117 = scmp.eq.s32.totalorder %s11, 0
    %p118 = por %p116, %p117
    %p119 = scmp.ne.s32.totalorder %s111, %s113
    %p120 = scmp.eq.s32.totalorder %s16, 3
    %p121 = por %p119, %p120
    %p122 = scmp.ne.s32.totalorder %s113, %s114
    %p123 = scmp.eq.s32.totalorder %s16, 0
    %p124 = por %p122, %p123
    %p125 = scmp.ne.s32.totalorder %s113, %s114
    %p126 = scmp.eq.s32.totalorder %s17, 3
    %p127 = por %p125, %p126
    %p129 = scmp.ne.s32.totalorder %s114, %s128
    %p130 = scmp.eq.s32.totalorder %s17, 0
    %p131 = por %p129, %p130
    %s133 = sadd.s32 %s132, 1
    %p136 = scmp.eq.s32.totalorder %s11, 3
    %p137 = scmp.ne.s32.totalorder %s132, %s134
    %p138 = scmp.eq.s32.totalorder %s11, 0
    %p139 = por %p137, %p138
    %p140 = scmp.ne.s32.totalorder %s132, %s134
    %p141 = scmp.eq.s32.totalorder %s16, 3
    %p142 = por %p140, %p141
    %p143 = scmp.ne.s32.totalorder %s134, %s135
    %p144 = scmp.eq.s32.totalorder %s16, 0
    %p145 = por %p143, %p144
    %p146 = scmp.ne.s32.totalorder %s134, %s135
    %p147 = scmp.eq.s32.totalorder %s17, 3
    %p148 = por %p146, %p147
    %p150 = scmp.ne.s32.totalorder %s135, %s149
    %p151 = scmp.eq.s32.totalorder %s17, 0
    %p152 = por %p150, %p151
    %s153 = ssub.s32 %s18, %s30
    %s154 = ssub.s32 %s19, %s26
    %s155 = sor.u32 %s153, %s154
    %p156 = scmp.eq.s32.totalorder %s155, 0
    %s158 = sadd.s32 %s157, 1
    %s159 = scalar_select %p156, %s157, %s158
    %p162 = pneg %p156
    %p163 = scmp.eq.s32.totalorder %s11, 3
    %p164 = por %p162, %p163
    %p165 = scmp.ne.s32.totalorder %s157, %s160
    %p166 = scmp.eq.s32.totalorder %s11, 0
    %p167 = por %p165, %p166
    %p168 = scmp.ne.s32.totalorder %s157, %s160
    %p169 = scmp.eq.s32.totalorder %s16, 3
    %p170 = por %p168, %p169
    %p171 = scmp.ne.s32.totalorder %s160, %s161
    %p172 = scmp.eq.s32.totalorder %s16, 0
    %p173 = por %p171, %p172
    %p174 = scmp.ne.s32.totalorder %s160, %s161
    %p175 = scmp.eq.s32.totalorder %s17, 3
    %p176 = por %p174, %p175
    %p178 = scmp.ne.s32.totalorder %s161, %s177
    %p179 = scmp.eq.s32.totalorder %s17, 0
    %p180 = por %p178, %p179
    %p181 = scmp.le.s32.totalorder 1, %s11
    %p182 = scmp.lt.s32.totalorder %s11, 5
    %p183 = pnand %p181, %p182
    %p184 = pneg %p183
    // Predicated region
    $region9: #{ppm.3} parent=5 // pred_check
      _
    $region10: #{ppm.3} parent=5 // pred_check_branch
      %186 = sbr.rel (%p183) target = $region12
    $region11: #{ppm.3} parent=5 // pred_region
      %s187 = ssub.s32 %s11, 1
      // Predicated region
      $region13: #{ppm.3} parent=11 // pred_check
        %p188 = pneg %p124
      $region14: #{ppm.3} parent=11 // pred_check_branch
        %190 = sbr.rel (%p188) target = $region16
      $region15: #{ppm.3} parent=11 // pred_region
        _
      $region16: #{ppm.3} parent=11 // pred_fallthru
        _
      // Predicated region
      $region17: #{ppm.3} parent=11 // pred_check
        %p191 = pneg %p145
      $region18: #{ppm.3} parent=11 // pred_check_branch
        %193 = sbr.rel (%p191) target = $region20
      $region19: #{ppm.3} parent=11 // pred_region
        _
      $region20: #{ppm.3} parent=11 // pred_fallthru
        _
    $region12: #{ppm.3} parent=5 // pred_fallthru
      _
    %p194 = scmp.lt.s32.totalorder %s11, 4
    // Predicated region
    $region21: #{ppm.3} parent=5 // pred_check
      %p195 = pneg %p194
    $region22: #{ppm.3} parent=5 // pred_check_branch
      %197 = sbr.rel (%p195) target = $region24
    $region23: #{ppm.3} parent=5 // pred_region
      // Predicated region
      $region25: #{ppm.3} parent=23 // pred_check
        %p198 = pneg %p45
      $region26: #{ppm.3} parent=23 // pred_check_branch
        %200 = sbr.rel (%p198) target = $region28
      $region27: #{ppm.3} parent=23 // pred_region
        %s201 = smul.u32 16, %s19
        %p202 = scmp.lt.s32.totalorder %s18, 1
        %s203 = scalar_select %p202, %s18, 1
        %p204 = scmp.lt.s32.totalorder %s201, 31
        %s205 = scalar_select %p204, %s201, 31
        %s206 = smul.addr %s203, 32
        %s207 = sadd.s32 %s205, %s206
        %s208 = smul.addr %s207, 4
        %s209 = scalar_lea.vmem %s0, %s208
        %s210 = smul.u32 16, %s19
      $region28: #{ppm.3} parent=23 // pred_fallthru
        _
      // Predicated region
      $region29: #{ppm.3} parent=23 // pred_check
        %p211 = pneg %p71
      $region30: #{ppm.3} parent=23 // pred_check_branch
        %213 = sbr.rel (%p211) target = $region32
      $region31: #{ppm.3} parent=23 // pred_region
        %s214 = smul.u32 16, %s19
        %p215 = scmp.lt.s32.totalorder %s214, 31
        %s216 = scalar_select %p215, %s214, 31
        %s217 = smul.addr %s216, 4
        %s218 = scalar_lea.vmem %s1, %s217
        %s219 = smul.u32 16, %s19
      $region32: #{ppm.3} parent=23 // pred_fallthru
        _
      // Predicated region
      $region33: #{ppm.3} parent=23 // pred_check
        %p220 = pneg %p97
      $region34: #{ppm.3} parent=23 // pred_check_branch
        %222 = sbr.rel (%p220) target = $region36
      $region35: #{ppm.3} parent=23 // pred_region
        %p223 = scmp.lt.s32.totalorder %s18, 1
        %s224 = scalar_select %p223, %s18, 1
        %s225 = smul.addr %s224, 7
        %s226 = smul.addr %s225, 8
        %s227 = scalar_lea.vmem %s2, %s226
      $region36: #{ppm.3} parent=23 // pred_fallthru
        _
    $region24: #{ppm.3} parent=5 // pred_fallthru
      _
    %p228 = scmp.le.s32.totalorder 1, %s11
    %p229 = scmp.lt.s32.totalorder %s11, 5
    %p230 = pnand %p228, %p229
    %p231 = pneg %p230
    // Predicated region
    $region37: #{ppm.3} parent=5 // pred_check
      _
    $region38: #{ppm.3} parent=5 // pred_check_branch
      %233 = sbr.rel (%p230) target = $region40
    $region39: #{ppm.3} parent=5 // pred_region
      %s234 = ssub.s32 %s11, 1
      %s235 = smul.u32 16, %s21
      %p236 = scmp.lt.s32.totalorder %s20, 1
      %s237 = scalar_select %p236, %s20, 1
      %p238 = scmp.lt.s32.totalorder %s235, 31
      %s239 = scalar_select %p238, %s235, 31
      %s240 = smul.addr %s237, 32
      %s241 = sadd.s32 %s239, %s240
      %s242 = smul.addr %s241, 4
      %s243 = scalar_lea.vmem %s0, %s242
      %p244 = pneg %p51
      %p245 = pneg %p48
      %s246 = smul.u32 16, %s21
      %p247 = scmp.lt.s32.totalorder %s246, 31
      %s248 = scalar_select %p247, %s246, 31
      %s249 = smul.addr %s248, 4
      %s250 = scalar_lea.vmem %s1, %s249
      %p251 = pneg %p77
      %p252 = pneg %p74
      %p253 = scmp.lt.s32.totalorder %s20, 1
      %s254 = scalar_select %p253, %s20, 1
      %s255 = smul.addr %s254, 7
      %s256 = smul.addr %s255, 8
      %s257 = scalar_lea.vmem %s2, %s256
      %p258 = pneg %p103
      %p259 = pneg %p100
      %p260 = pneg %p124
      %p261 = pneg %p121
      %p262 = pneg %p145
      %p263 = pneg %p142
      %p264 = pneg %p173
      %p265 = pneg %p170
      %s266 = smul.u32 16, %s21
      %p267 = scmp.lt.s32.totalorder %s20, 1
      %s268 = scalar_select %p267, %s20, 1
      %p269 = scmp.lt.s32.totalorder %s266, 31
      %s270 = scalar_select %p269, %s266, 31
      %s271 = smul.addr %s268, 32
      %s272 = sadd.s32 %s270, %s271
      %s273 = smul.addr %s272, 8
      %s274 = scalar_lea.vmem %s5, %s273
      %s275 = smul.u32 16, %s21
      %p276 = scmp.lt.s32.totalorder %s20, 1
      %s277 = scalar_select %p276, %s20, 1
      %p278 = scmp.lt.s32.totalorder %s275, 31
      %s279 = scalar_select %p278, %s275, 31
      %s280 = smul.addr %s277, 32
      %s281 = sadd.s32 %s279, %s280
      %s282 = smul.addr %s281, 4
      %s283 = scalar_lea.vmem %s0, %s282
      %s284 = smul.u32 16, %s21
      %s285 = smul.u32 16, %s21
      %p286 = scmp.lt.s32.totalorder %s285, 31
      %s287 = scalar_select %p286, %s285, 31
      %s288 = smul.addr %s287, 4
      %s289 = scalar_lea.vmem %s1, %s288
      %s290 = smul.u32 16, %s21
      %p291 = scmp.lt.s32.totalorder %s20, 1
      %s292 = scalar_select %p291, %s20, 1
      %s293 = smul.addr %s292, 7
      %s294 = smul.addr %s293, 8
      %s295 = scalar_lea.vmem %s2, %s294
      %s296 = smul.u32 16, %s21
      %p297 = scmp.lt.s32.totalorder %s20, 1
      %s298 = scalar_select %p297, %s20, 1
      %p299 = scmp.lt.s32.totalorder %s296, 31
      %s300 = scalar_select %p299, %s296, 31
      %s301 = smul.addr %s298, 32
      %s302 = sadd.s32 %s300, %s301
      %s303 = smul.addr %s302, 8
      %s304 = scalar_lea.vmem %s5, %s303
      %s305 = smul.u32 16, %s21
      %v307 = vld [vmem:[%s283] sm:$0xf]
      %v308 = vld [vmem:[%s283 + $0x4] sm:$0xf]
      %v309 = vld [vmem:[%s283 + $0x8] sm:$0xf]
      %v310 = vld [vmem:[%s283 + $0xc] sm:$0xf]
      %v311 = vld [vmem:[%s283 + $0x10] sm:$0xf]
      %v312 = vld [vmem:[%s283 + $0x14] sm:$0xf]
      %v313 = vld [vmem:[%s283 + $0x18] sm:$0xf]
      %v314 = vld [vmem:[%s283 + $0x1c] sm:$0xf]
      %v315 = vld [vmem:[%s283 + $0x20] sm:$0xf]
      %v316 = vld [vmem:[%s283 + $0x24] sm:$0xf]
      %v317 = vld [vmem:[%s283 + $0x28] sm:$0xf]
      %v318 = vld [vmem:[%s283 + $0x2c] sm:$0xf]
      %v319 = vld [vmem:[%s283 + $0x30] sm:$0xf]
      %v320 = vld [vmem:[%s283 + $0x34] sm:$0xf]
      %v321 = vld [vmem:[%s283 + $0x38] sm:$0xf]
      %v322 = vld [vmem:[%s283 + $0x3c] sm:$0xf]
      %v323 = vld [vmem:[%s3] sm:$0xf]
      %v324 = vld [vmem:[%s3 + $0x4] sm:$0xf]
      %v325 = vld [vmem:[%s289] sm:$0xf]
      %v326 = vld [vmem:[%s289 + $0x4] sm:$0xf]
      %v327 = vld [vmem:[%s289 + $0x8] sm:$0xf]
      %v328 = vld [vmem:[%s289 + $0xc] sm:$0xf]
      %v329 = vld [vmem:[%s289 + $0x10] sm:$0xf]
      %v330 = vld [vmem:[%s289 + $0x14] sm:$0xf]
      %v331 = vld [vmem:[%s289 + $0x18] sm:$0xf]
      %v332 = vld [vmem:[%s289 + $0x1c] sm:$0xf]
      %v333 = vld [vmem:[%s289 + $0x20] sm:$0xf]
      %v334 = vld [vmem:[%s289 + $0x24] sm:$0xf]
      %v335 = vld [vmem:[%s289 + $0x28] sm:$0xf]
      %v336 = vld [vmem:[%s289 + $0x2c] sm:$0xf]
      %v337 = vld [vmem:[%s289 + $0x30] sm:$0xf]
      %v338 = vld [vmem:[%s289 + $0x34] sm:$0xf]
      %v339 = vld [vmem:[%s289 + $0x38] sm:$0xf]
      %v340 = vld [vmem:[%s289 + $0x3c] sm:$0xf]
      %v341 = vld [vmem:[%s295] sm:$0xff]
      %v342 = vld [vmem:[%s295 + $0x8] sm:$0xff]
      %v343 = vld [vmem:[%s295 + $0x10] sm:$0xff]
      %v344 = vld [vmem:[%s295 + $0x18] sm:$0xff]
      %v345 = vld [vmem:[%s295 + $0x20] sm:$0xff]
      %v346 = vld [vmem:[%s295 + $0x28] sm:$0xff]
      %v347 = vld [vmem:[%s295 + $0x30] sm:$0x3]
      %v348 = vpack.c.bf16 %v342, %v341
      %v349 = vpack.c.bf16 %v344, %v343
      %v350 = vpack.c.bf16 %v346, %v345
      %v351 = vpack.c.bf16 %v347, %v347
      %v368 = vunpack.c.l.b16 %v325
      %v369 = vunpack.c.l.b16 %v326
      %v370 = vunpack.c.l.b16 %v327
      %v371 = vunpack.c.l.b16 %v328
      %v372 = vunpack.c.l.b16 %v329
      %v373 = vunpack.c.l.b16 %v330
      %v374 = vunpack.c.l.b16 %v331
      %v375 = vunpack.c.l.b16 %v332
      %v376 = vunpack.c.l.b16 %v333
      %v377 = vunpack.c.l.b16 %v334
      %v378 = vunpack.c.l.b16 %v335
      %v379 = vunpack.c.l.b16 %v336
      %v380 = vunpack.c.l.b16 %v337
      %v381 = vunpack.c.l.b16 %v338
      %v382 = vunpack.c.l.b16 %v339
      %v383 = vunpack.c.l.b16 %v340
      %v384 = vpack.c.b16 %v369, %v368
      %v385 = vpack.c.b16 %v371, %v370
      %v386 = vpack.c.b16 %v373, %v372
      %v387 = vpack.c.b16 %v375, %v374
      %v388 = vpack.c.b16 %v377, %v376
      %v389 = vpack.c.b16 %v379, %v378
      %v390 = vpack.c.b16 %v381, %v380
      %v391 = vpack.c.b16 %v383, %v382
      %vm392 = vcmask 408576
      %v394 = vsel %vm392, %v384, 0
      %v397 = vsel %vm392, %v385, 0
      %v400 = vsel %vm392, %v386, 0
      %v403 = vsel %vm392, %v387, 0
      %v406 = vsel %vm392, %v388, 0
      %v409 = vsel %vm392, %v389, 0
      %v412 = vsel %vm392, %v390, 0
      %v415 = vsel %vm392, %v391, 0
      %vm417 = vcmask 1040384
      %v419 = vsel %vm417, %v351, 0
      %421 = vmatprep.subr.bf16.mxu0 0
      %422 = vmatpush1.bf16.msra.mxu0 %v348
      %423 = vmatprep.subr.bf16.mxu0 0
      %424 = vmatpush1.bf16.msra.mxu0 %v349
      %425 = vmatprep.subr.bf16.mxu0 0
      %426 = vmatpush1.bf16.msra.mxu0 %v350
      %427 = vmatprep.subr.bf16.mxu0 0
      %428 = vmatpush1.bf16.msra.mxu0 %v419
      %429 = vmatprep.subr.bf16.mxu0 0
      %430 = vmatpush1.bf16.msra.mxu0 0
      %431 = vmatprep.subr.bf16.mxu0 0
      %432 = vmatpush1.bf16.msra.mxu0 0
      %433 = vmatprep.subr.bf16.mxu0 0
      %434 = vmatpush1.bf16.msra.mxu0 0
      %435 = vmatprep.subr.bf16.mxu0 0
      %436 = vmatpush1.bf16.msra.mxu0 0
      %437 = vmatprep.subr.bf16.mxu0 0
      %438 = vmatpush1.bf16.msra.mxu0 0
      %439 = vmatprep.subr.bf16.mxu0 0
      %440 = vmatpush1.bf16.msra.mxu0 0
      %441 = vmatprep.subr.bf16.mxu0 0
      %442 = vmatpush1.bf16.msra.mxu0 0
      %443 = vmatprep.subr.bf16.mxu0 0
      %444 = vmatpush1.bf16.msra.mxu0 0
      %445 = vmatprep.subr.bf16.mxu0 0
      %446 = vmatpush1.bf16.msra.mxu0 0
      %447 = vmatprep.subr.bf16.mxu0 0
      %448 = vmatpush1.bf16.msra.mxu0 0
      %449 = vmatprep.subr.bf16.mxu0 0
      %450 = vmatpush1.bf16.msra.mxu0 0
      %451 = vmatprep.subr.bf16.mxu0 0
      %452 = vmatpush1.bf16.msra.mxu0 0
      %453 = vmatprep.mubr.bf16.mxu0 0
      %454 = vmatmul.mubr.bf16.gmra.mrb[0].mxu0 %v394
      %v455 = vpop.f32.mrb[0].mxu0
      %v456 = vadd.f32 0.0, %v455
      %v457 = vpop.f32.mrb[0].mxu0
      %v458 = vpop.f32.mrb[0].mxu0
      %v459 = vadd.f32 0.0, %v458
      %v460 = vpop.f32.mrb[0].mxu0
      %461 = vmatprep.mubr.bf16.mxu0 0
      %462 = vmatmul.mubr.bf16.gmra.mrb[0].mxu0 %v397
      %v463 = vpop.f32.mrb[0].mxu0
      %v464 = vadd.f32 0.0, %v463
      %v465 = vpop.f32.mrb[0].mxu0
      %v466 = vpop.f32.mrb[0].mxu0
      %v467 = vadd.f32 0.0, %v466
      %v468 = vpop.f32.mrb[0].mxu0
      %469 = vmatprep.mubr.bf16.mxu0 0
      %470 = vmatmul.mubr.bf16.gmra.mrb[0].mxu0 %v400
      %v471 = vpop.f32.mrb[0].mxu0
      %v472 = vadd.f32 0.0, %v471
      %v473 = vpop.f32.mrb[0].mxu0
      %v474 = vpop.f32.mrb[0].mxu0
      %v475 = vadd.f32 0.0, %v474
      %v476 = vpop.f32.mrb[0].mxu0
      %477 = vmatprep.mubr.bf16.mxu0 0
      %478 = vmatmul.mubr.bf16.gmra.mrb[0].mxu0 %v403
      %v479 = vpop.f32.mrb[0].mxu0
      %v480 = vadd.f32 0.0, %v479
      %v481 = vpop.f32.mrb[0].mxu0
      %v482 = vpop.f32.mrb[0].mxu0
      %v483 = vadd.f32 0.0, %v482
      %v484 = vpop.f32.mrb[0].mxu0
      %485 = vmatprep.mubr.bf16.mxu0 0
      %486 = vmatmul.mubr.bf16.gmra.mrb[0].mxu0 %v406
      %v487 = vpop.f32.mrb[0].mxu0
      %v488 = vadd.f32 0.0, %v487
      %v489 = vpop.f32.mrb[0].mxu0
      %v490 = vpop.f32.mrb[0].mxu0
      %v491 = vadd.f32 0.0, %v490
      %v492 = vpop.f32.mrb[0].mxu0
      %493 = vmatprep.mubr.bf16.mxu0 0
      %494 = vmatmul.mubr.bf16.gmra.mrb[0].mxu0 %v409
      %v495 = vpop.f32.mrb[0].mxu0
      %v496 = vadd.f32 0.0, %v495
      %v497 = vpop.f32.mrb[0].mxu0
      %v498 = vpop.f32.mrb[0].mxu0
      %v499 = vadd.f32 0.0, %v498
      %v500 = vpop.f32.mrb[0].mxu0
      %501 = vmatprep.mubr.bf16.mxu0 0
      %502 = vmatmul.mubr.bf16.gmra.mrb[0].mxu0 %v412
      %v503 = vpop.f32.mrb[0].mxu0
      %v504 = vadd.f32 0.0, %v503
      %v505 = vpop.f32.mrb[0].mxu0
      %v506 = vpop.f32.mrb[0].mxu0
      %v507 = vadd.f32 0.0, %v506
      %v508 = vpop.f32.mrb[0].mxu0
      %509 = vmatprep.mubr.bf16.mxu0 0
      %510 = vmatmul.mubr.bf16.gmra.mrb[0].mxu0 %v415
      %v511 = vpop.f32.mrb[0].mxu0
      %v512 = vadd.f32 0.0, %v511
      %v513 = vpop.f32.mrb[0].mxu0
      %v514 = vpop.f32.mrb[0].mxu0
      %v515 = vadd.f32 0.0, %v514
      %v516 = vpop.f32.mrb[0].mxu0
      %517 = vdwg.mxu0
      %v534 = vunpack.c.l.b16 %v307
      %v535 = vunpack.c.l.b16 %v308
      %v536 = vunpack.c.l.b16 %v309
      %v537 = vunpack.c.l.b16 %v310
      %v538 = vunpack.c.l.b16 %v311
      %v539 = vunpack.c.l.b16 %v312
      %v540 = vunpack.c.l.b16 %v313
      %v541 = vunpack.c.l.b16 %v314
      %v542 = vunpack.c.l.b16 %v315
      %v543 = vunpack.c.l.b16 %v316
      %v544 = vunpack.c.l.b16 %v317
      %v545 = vunpack.c.l.b16 %v318
      %v546 = vunpack.c.l.b16 %v319
      %v547 = vunpack.c.l.b16 %v320
      %v548 = vunpack.c.l.b16 %v321
      %v549 = vunpack.c.l.b16 %v322
      %v550 = vpack.c.b16 %v535, %v534
      %v551 = vpack.c.b16 %v537, %v536
      %v552 = vpack.c.b16 %v539, %v538
      %v553 = vpack.c.b16 %v541, %v540
      %v554 = vpack.c.b16 %v543, %v542
      %v555 = vpack.c.b16 %v545, %v544
      %v556 = vpack.c.b16 %v547, %v546
      %v557 = vpack.c.b16 %v549, %v548
      %v560 = vunpack.c.l.b16 %v323
      %v561 = vunpack.c.l.b16 %v324
      %v562 = vpack.c.b16 %v561, %v560
      %vm564 = vcmask 130048
      %v566 = vsel %vm564, %v550, 0
      %v569 = vsel %vm564, %v551, 0
      %v572 = vsel %vm564, %v552, 0
      %v575 = vsel %vm564, %v553, 0
      %v578 = vsel %vm564, %v554, 0
      %v581 = vsel %vm564, %v555, 0
      %v584 = vsel %vm564, %v556, 0
      %v587 = vsel %vm564, %v557, 0
      %589 = vmatprep.subr.bf16.mxu0 0
      %590 = vmatpush1.bf16.msra.mxu0 %v562
      %591 = vmatprep.subr.bf16.mxu0 0
      %592 = vmatpush1.bf16.msra.mxu0 0
      %593 = vmatprep.subr.bf16.mxu0 0
      %594 = vmatpush1.bf16.msra.mxu0 0
      %595 = vmatprep.subr.bf16.mxu0 0
      %596 = vmatpush1.bf16.msra.mxu0 0
      %597 = vmatprep.subr.bf16.mxu0 0
      %598 = vmatpush1.bf16.msra.mxu0 0
      %599 = vmatprep.subr.bf16.mxu0 0
      %600 = vmatpush1.bf16.msra.mxu0 0
      %601 = vmatprep.subr.bf16.mxu0 0
      %602 = vmatpush1.bf16.msra.mxu0 0
      %603 = vmatprep.subr.bf16.mxu0 0
      %604 = vmatpush1.bf16.msra.mxu0 0
      %605 = vmatprep.subr.bf16.mxu0 0
      %606 = vmatpush1.bf16.msra.mxu0 0
      %607 = vmatprep.subr.bf16.mxu0 0
      %608 = vmatpush1.bf16.msra.mxu0 0
      %609 = vmatprep.subr.bf16.mxu0 0
      %610 = vmatpush1.bf16.msra.mxu0 0
      %611 = vmatprep.subr.bf16.mxu0 0
      %612 = vmatpush1.bf16.msra.mxu0 0
      %613 = vmatprep.subr.bf16.mxu0 0
      %614 = vmatpush1.bf16.msra.mxu0 0
      %615 = vmatprep.subr.bf16.mxu0 0
      %616 = vmatpush1.bf16.msra.mxu0 0
      %617 = vmatprep.subr.bf16.mxu0 0
      %618 = vmatpush1.bf16.msra.mxu0 0
      %619 = vmatprep.subr.bf16.mxu0 0
      %620 = vmatpush1.bf16.msra.mxu0 0
      %621 = vmatprep.mubr.bf16.mxu0 0
      %622 = vmatmul.mubr.bf16.gmra.mrb[0].mxu0 %v566
      %v623 = vpop.f32.mrb[0].mxu0
      %v624 = vadd.f32 %v456, %v623
      %v625 = vpop.f32.mrb[0].mxu0
      %v626 = vpop.f32.mrb[0].mxu0
      %v627 = vadd.f32 %v459, %v626
      %v628 = vpop.f32.mrb[0].mxu0
      %629 = vmatprep.mubr.bf16.mxu0 0
      %630 = vmatmul.mubr.bf16.gmra.mrb[0].mxu0 %v569
      %v631 = vpop.f32.mrb[0].mxu0
      %v632 = vadd.f32 %v464, %v631
      %v633 = vpop.f32.mrb[0].mxu0
      %v634 = vpop.f32.mrb[0].mxu0
      %v635 = vadd.f32 %v467, %v634
      %v636 = vpop.f32.mrb[0].mxu0
      %637 = vmatprep.mubr.bf16.mxu0 0
      %638 = vmatmul.mubr.bf16.gmra.mrb[0].mxu0 %v572
      %v639 = vpop.f32.mrb[0].mxu0
      %v640 = vadd.f32 %v472, %v639
      %v641 = vpop.f32.mrb[0].mxu0
      %v642 = vpop.f32.mrb[0].mxu0
      %v643 = vadd.f32 %v475, %v642
      %v644 = vpop.f32.mrb[0].mxu0
      %645 = vmatprep.mubr.bf16.mxu0 0
      %646 = vmatmul.mubr.bf16.gmra.mrb[0].mxu0 %v575
      %v647 = vpop.f32.mrb[0].mxu0
      %v648 = vadd.f32 %v480, %v647
      %v649 = vpop.f32.mrb[0].mxu0
      %v650 = vpop.f32.mrb[0].mxu0
      %v651 = vadd.f32 %v483, %v650
      %v652 = vpop.f32.mrb[0].mxu0
      %653 = vmatprep.mubr.bf16.mxu0 0
      %654 = vmatmul.mubr.bf16.gmra.mrb[0].mxu0 %v578
      %v655 = vpop.f32.mrb[0].mxu0
      %v656 = vadd.f32 %v488, %v655
      %v657 = vpop.f32.mrb[0].mxu0
      %v658 = vpop.f32.mrb[0].mxu0
      %v659 = vadd.f32 %v491, %v658
      %v660 = vpop.f32.mrb[0].mxu0
      %661 = vmatprep.mubr.bf16.mxu0 0
      %662 = vmatmul.mubr.bf16.gmra.mrb[0].mxu0 %v581
      %v663 = vpop.f32.mrb[0].mxu0
      %v664 = vadd.f32 %v496, %v663
      %v665 = vpop.f32.mrb[0].mxu0
      %v666 = vpop.f32.mrb[0].mxu0
      %v667 = vadd.f32 %v499, %v666
      %v668 = vpop.f32.mrb[0].mxu0
      %669 = vmatprep.mubr.bf16.mxu0 0
      %670 = vmatmul.mubr.bf16.gmra.mrb[0].mxu0 %v584
      %v671 = vpop.f32.mrb[0].mxu0
      %v672 = vadd.f32 %v504, %v671
      %v673 = vpop.f32.mrb[0].mxu0
      %v674 = vpop.f32.mrb[0].mxu0
      %v675 = vadd.f32 %v507, %v674
      %v676 = vpop.f32.mrb[0].mxu0
      %677 = vmatprep.mubr.bf16.mxu0 0
      %678 = vmatmul.mubr.bf16.gmra.mrb[0].mxu0 %v587
      %v679 = vpop.f32.mrb[0].mxu0
      %v680 = vadd.f32 %v512, %v679
      %v681 = vpop.f32.mrb[0].mxu0
      %v682 = vpop.f32.mrb[0].mxu0
      %v683 = vadd.f32 %v515, %v682
      %v684 = vpop.f32.mrb[0].mxu0
      %685 = vdwg.mxu0
      %v686 = vld [vmem:[%s4] sm:$0x1]
      %v688 = vlaneseq
      %v689 = vshrl.u32 %v688, 7
      %v690 = vsub.s32 0, %v689
      %v691 = vrot.slane %v686, %v690
      %v693 = vadd.f32 %v624, %v691
      %v694 = vadd.f32 %v627, %v691
      %v695 = vadd.f32 %v632, %v691
      %v696 = vadd.f32 %v635, %v691
      %v697 = vadd.f32 %v640, %v691
      %v698 = vadd.f32 %v643, %v691
      %v699 = vadd.f32 %v648, %v691
      %v700 = vadd.f32 %v651, %v691
      %v701 = vadd.f32 %v656, %v691
      %v702 = vadd.f32 %v659, %v691
      %v703 = vadd.f32 %v664, %v691
      %v704 = vadd.f32 %v667, %v691
      %v705 = vadd.f32 %v672, %v691
      %v706 = vadd.f32 %v675, %v691
      %v707 = vadd.f32 %v680, %v691
      %v708 = vadd.f32 %v683, %v691
      %v709 = vmax.f32 %v693, 0.0
      %v710 = vmax.f32 %v694, 0.0
      %v711 = vmax.f32 %v695, 0.0
      %v712 = vmax.f32 %v696, 0.0
      %v713 = vmax.f32 %v697, 0.0
      %v714 = vmax.f32 %v698, 0.0
      %v715 = vmax.f32 %v699, 0.0
      %v716 = vmax.f32 %v700, 0.0
      %v717 = vmax.f32 %v701, 0.0
      %v718 = vmax.f32 %v702, 0.0
      %v719 = vmax.f32 %v703, 0.0
      %v720 = vmax.f32 %v704, 0.0
      %v721 = vmax.f32 %v705, 0.0
      %v722 = vmax.f32 %v706, 0.0
      %v723 = vmax.f32 %v707, 0.0
      %v724 = vmax.f32 %v708, 0.0
      %vm725 = vcmask 64512
      %726 = vst.msk [vmem:[%s304] sm:$0xff] %vm725, %v709
      %727 = vst.msk [vmem:[%s304 + $0x8] sm:$0xff] %vm725, %v710
      %728 = vst.msk [vmem:[%s304 + $0x10] sm:$0xff] %vm725, %v711
      %729 = vst.msk [vmem:[%s304 + $0x18] sm:$0xff] %vm725, %v712
      %730 = vst.msk [vmem:[%s304 + $0x20] sm:$0xff] %vm725, %v713
      %731 = vst.msk [vmem:[%s304 + $0x28] sm:$0xff] %vm725, %v714
      %732 = vst.msk [vmem:[%s304 + $0x30] sm:$0xff] %vm725, %v715
      %733 = vst.msk [vmem:[%s304 + $0x38] sm:$0xff] %vm725, %v716
      %734 = vst.msk [vmem:[%s304 + $0x40] sm:$0xff] %vm725, %v717
      %735 = vst.msk [vmem:[%s304 + $0x48] sm:$0xff] %vm725, %v718
      %736 = vst.msk [vmem:[%s304 + $0x50] sm:$0xff] %vm725, %v719
      %737 = vst.msk [vmem:[%s304 + $0x58] sm:$0xff] %vm725, %v720
      %738 = vst.msk [vmem:[%s304 + $0x60] sm:$0xff] %vm725, %v721
      %739 = vst.msk [vmem:[%s304 + $0x68] sm:$0xff] %vm725, %v722
      %740 = vst.msk [vmem:[%s304 + $0x70] sm:$0xff] %vm725, %v723
      %741 = vst.msk [vmem:[%s304 + $0x78] sm:$0xff] %vm725, %v724
      %s742 = smul.u32 16, %s21
      %p743 = scmp.lt.s32.totalorder %s20, 1
      %s744 = scalar_select %p743, %s20, 1
      %p745 = scmp.lt.s32.totalorder %s742, 31
      %s746 = scalar_select %p745, %s742, 31
      %s747 = smul.addr %s744, 32
      %s748 = sadd.s32 %s746, %s747
      %s749 = smul.addr %s748, 8
      %s750 = scalar_lea.vmem %s5, %s749
      // Predicated region
      $region41: #{ppm.3} parent=39 // pred_check
        %p751 = pneg %p170
      $region42: #{ppm.3} parent=39 // pred_check_branch
        %753 = sbr.rel (%p751) target = $region44
      $region43: #{ppm.3} parent=39 // pred_region
        %s754 = smul.u32 16, %s21
      $region44: #{ppm.3} parent=39 // pred_fallthru
        _
    $region40: #{ppm.3} parent=5 // pred_fallthru
      _
    %p755 = scmp.le.s32.totalorder 2, %s11
    // Predicated region
    $region45: #{ppm.3} parent=5 // pred_check
      %p756 = pneg %p755
    $region46: #{ppm.3} parent=5 // pred_check_branch
      %758 = sbr.rel (%p756) target = $region48
    $region47: #{ppm.3} parent=5 // pred_region
      %s759 = ssub.s32 %s11, 2
      // Predicated region
      $region49: #{ppm.3} parent=47 // pred_check
        %p760 = pneg %p176
      $region50: #{ppm.3} parent=47 // pred_check_branch
        %762 = sbr.rel (%p760) target = $region52
      $region51: #{ppm.3} parent=47 // pred_region
        %s763 = smul.u32 16, %s23
        %p764 = scmp.lt.s32.totalorder %s22, 1
        %s765 = scalar_select %p764, %s22, 1
        %p766 = scmp.lt.s32.totalorder %s763, 31
        %s767 = scalar_select %p766, %s763, 31
        %s768 = smul.addr %s765, 32
        %s769 = sadd.s32 %s767, %s768
        %s770 = smul.addr %s769, 8
        %s771 = scalar_lea.vmem %s5, %s770
      $region52: #{ppm.3} parent=47 // pred_fallthru
        _
    $region48: #{ppm.3} parent=5 // pred_fallthru
      _
  $region6: #{ppm.3} parent=0 // loop_footer
    %s15 = sadd.s32 1, %s11
  $region7: #{ppm.3} parent=0 // loop_footer_branch
    %10 = sbr.rel target = $region3
  $region8: #{ppm.3} parent=0 // loop_exit
    _

// kernel: ppm.2
$region0: #{ppm.2}
  #allocation0 [shape = 'u32[]', space=smem, size = 0x4, offset = 0x4, fixed_abs, tag = 'smem constant byte address 0x4 - core index']
  #allocation1 [shape = 'u32[144,128]{1,0:T(1,128)}', space=vmem, size = 0x12000, scoped, tag = 'internal scratch']
  #allocation2 [shape = 'f32[50,16]{1,0:T(8,128)}', space=vmem, size = 0x7000, scoped, tag = 'scratch operand']
  %s0 = inlined_call_operand.vmem [shape: bf16[2,256,16], index: 0, kind: input, shape index: {}]
  %s1 = inlined_call_operand.vmem [shape: bf16[50,256], index: 1, kind: input, shape index: {}]
  %s2 = inlined_call_operand.vmem [shape: bf16[64,4], index: 2, kind: input, shape index: {}]
  %s3 = inlined_call_operand.vmem [shape: f32[4,4], index: 3, kind: input, shape index: {}]
  %s4 = inlined_call_operand.vmem [shape: bf16[16,8], index: 4, kind: input, shape index: {}]
  %s5 = inlined_call_operand.vmem [shape: f32[2,50,4], index: 5, kind: output, shape index: {0}]
  %s6 = inlined_call_operand.vmem [shape: f32[2,50,8], index: 6, kind: output, shape index: {1}]
  %7 = xla_tuple %s5, %s6
  %s8 = sld [smem:[#allocation0]]
  $region110: #{ppm.2} parent=0
    _
  %s10 = ssub.s32 1, %s8
  %s11 = scalar_select 0, %s10, %s8
  $region1: #{ppm.2} parent=0
    #allocation3 [shape = 'u8[28672]{0}', space=vmem, size = 0x7000, scoped, tag = 'input window, operand 1']
    loop: start=0, step=1, limit=6
    $region2: #{ppm.2} parent=1 // loop_pre_header
      _
    $region3: #{ppm.2} parent=1 // loop_header
      %s13 = sphi 0, %s17
      %p14 = scmp.ge.s32.totalorder %s13, 6
      %s20 = sphi 0, %s32
      %s21 = sphi 0, %s28
      %s22 = sphi 0, %s20
      %s23 = sphi 0, %s21
      %s24 = sphi 0, %s22
      %s25 = sphi 0, %s23
      %s37 = sphi 0, %s39
      %s40 = sphi 0, %s37
      %s41 = sphi 0, %s40
      %s57 = sphi 0, %s41
      %s63 = sphi 0, %s65
      %s66 = sphi 0, %s63
      %s67 = sphi 0, %s66
      %s83 = sphi 0, %s67
      %s87 = sphi 0, %s87
      %s89 = sphi 0, %s87
      %s90 = sphi 0, %s89
      %s104 = sphi 0, %s90
      %s108 = sphi 0, %s108
      %s110 = sphi 0, %s108
      %s111 = sphi 0, %s110
      %s125 = sphi 0, %s111
      %s129 = sphi 0, %s129
      %s131 = sphi 0, %s129
      %s132 = sphi 0, %s131
      %s146 = sphi 0, %s132
      %s152 = sphi 0, %s154
      %s155 = sphi 0, %s152
      %s156 = sphi 0, %s155
      %s172 = sphi 0, %s156
      %s178 = sphi 0, %s180
      %s181 = sphi 0, %s178
      %s182 = sphi 0, %s181
      %s198 = sphi 0, %s182
    $region4: #{ppm.2} parent=1 // loop_header_branch
      %16 = sbr.rel (%p14) target = $region8
    $region5: #{ppm.2} parent=1 // loop_body
      %s18 = ssub.s32 %s13, 1
      %s19 = ssub.s32 %s13, 2
      %s26 = sadd.s32 1, %s21
      %p27 = scmp.ge.s32.totalorder %s26, 2
      %s28 = scalar_select %p27, 0, %s26
      %s29 = sadd.s32 1, %s20
      %s30 = scalar_select %p27, %s29, %s20
      %p31 = scmp.ge.s32.totalorder %s30, 2
      %s32 = scalar_select %p31, 0, %s30
      %s33 = ssub.s32 %s20, %s32
      %s34 = ssub.s32 %s21, %s28
      %s35 = sor.u32 %s33, %s34
      %p36 = scmp.eq.s32.totalorder %s35, 0
      %s38 = sadd.s32 %s37, 1
      %s39 = scalar_select %p36, %s37, %s38
      %p42 = pneg %p36
      %p43 = scmp.eq.s32.totalorder %s13, 3
      %p44 = por %p42, %p43
      %p45 = scmp.ne.s32.totalorder %s37, %s40
      %p46 = scmp.eq.s32.totalorder %s13, 0
      %p47 = por %p45, %p46
      %p48 = scmp.ne.s32.totalorder %s37, %s40
      %p49 = scmp.eq.s32.totalorder %s18, 3
      %p50 = por %p48, %p49
      %p51 = scmp.ne.s32.totalorder %s40, %s41
      %p52 = scmp.eq.s32.totalorder %s18, 0
      %p53 = por %p51, %p52
      %p54 = scmp.ne.s32.totalorder %s40, %s41
      %p55 = scmp.eq.s32.totalorder %s19, 3
      %p56 = por %p54, %p55
      %p58 = scmp.ne.s32.totalorder %s41, %s57
      %p59 = scmp.eq.s32.totalorder %s19, 0
      %p60 = por %p58, %p59
      %s61 = ssub.s32 %s21, %s28
      %p62 = scmp.eq.s32.totalorder %s61, 0
      %s64 = sadd.s32 %s63, 1
      %s65 = scalar_select %p62, %s63, %s64
      %p68 = pneg %p62
      %p69 = scmp.eq.s32.totalorder %s13, 3
      %p70 = por %p68, %p69
      %p71 = scmp.ne.s32.totalorder %s63, %s66
      %p72 = scmp.eq.s32.totalorder %s13, 0
      %p73 = por %p71, %p72
      %p74 = scmp.ne.s32.totalorder %s63, %s66
      %p75 = scmp.eq.s32.totalorder %s18, 3
      %p76 = por %p74, %p75
      %p77 = scmp.ne.s32.totalorder %s66, %s67
      %p78 = scmp.eq.s32.totalorder %s18, 0
      %p79 = por %p77, %p78
      %p80 = scmp.ne.s32.totalorder %s66, %s67
      %p81 = scmp.eq.s32.totalorder %s19, 3
      %p82 = por %p80, %p81
      %p84 = scmp.ne.s32.totalorder %s67, %s83
      %p85 = scmp.eq.s32.totalorder %s19, 0
      %p86 = por %p84, %p85
      %s88 = sadd.s32 %s87, 1
      %p91 = scmp.eq.s32.totalorder %s13, 3
      %p92 = scmp.ne.s32.totalorder %s87, %s89
      %p93 = scmp.eq.s32.totalorder %s13, 0
      %p94 = por %p92, %p93
      %p95 = scmp.ne.s32.totalorder %s87, %s89
      %p96 = scmp.eq.s32.totalorder %s18, 3
      %p97 = por %p95, %p96
      %p98 = scmp.ne.s32.totalorder %s89, %s90
      %p99 = scmp.eq.s32.totalorder %s18, 0
      %p100 = por %p98, %p99
      %p101 = scmp.ne.s32.totalorder %s89, %s90
      %p102 = scmp.eq.s32.totalorder %s19, 3
      %p103 = por %p101, %p102
      %p105 = scmp.ne.s32.totalorder %s90, %s104
      %p106 = scmp.eq.s32.totalorder %s19, 0
      %p107 = por %p105, %p106
      %s109 = sadd.s32 %s108, 1
      %p112 = scmp.eq.s32.totalorder %s13, 3
      %p113 = scmp.ne.s32.totalorder %s108, %s110
      %p114 = scmp.eq.s32.totalorder %s13, 0
      %p115 = por %p113, %p114
      %p116 = scmp.ne.s32.totalorder %s108, %s110
      %p117 = scmp.eq.s32.totalorder %s18, 3
      %p118 = por %p116, %p117
      %p119 = scmp.ne.s32.totalorder %s110, %s111
      %p120 = scmp.eq.s32.totalorder %s18, 0
      %p121 = por %p119, %p120
      %p122 = scmp.ne.s32.totalorder %s110, %s111
      %p123 = scmp.eq.s32.totalorder %s19, 3
      %p124 = por %p122, %p123
      %p126 = scmp.ne.s32.totalorder %s111, %s125
      %p127 = scmp.eq.s32.totalorder %s19, 0
      %p128 = por %p126, %p127
      %s130 = sadd.s32 %s129, 1
      %p133 = scmp.eq.s32.totalorder %s13, 3
      %p134 = scmp.ne.s32.totalorder %s129, %s131
      %p135 = scmp.eq.s32.totalorder %s13, 0
      %p136 = por %p134, %p135
      %p137 = scmp.ne.s32.totalorder %s129, %s131
      %p138 = scmp.eq.s32.totalorder %s18, 3
      %p139 = por %p137, %p138
      %p140 = scmp.ne.s32.totalorder %s131, %s132
      %p141 = scmp.eq.s32.totalorder %s18, 0
      %p142 = por %p140, %p141
      %p143 = scmp.ne.s32.totalorder %s131, %s132
      %p144 = scmp.eq.s32.totalorder %s19, 3
      %p145 = por %p143, %p144
      %p147 = scmp.ne.s32.totalorder %s132, %s146
      %p148 = scmp.eq.s32.totalorder %s19, 0
      %p149 = por %p147, %p148
      %s150 = ssub.s32 %s20, %s32
      %p151 = scmp.eq.s32.totalorder %s150, 0
      %s153 = sadd.s32 %s152, 1
      %s154 = scalar_select %p151, %s152, %s153
      %p157 = pneg %p151
      %p158 = scmp.eq.s32.totalorder %s13, 3
      %p159 = por %p157, %p158
      %p160 = scmp.ne.s32.totalorder %s152, %s155
      %p161 = scmp.eq.s32.totalorder %s13, 0
      %p162 = por %p160, %p161
      %p163 = scmp.ne.s32.totalorder %s152, %s155
      %p164 = scmp.eq.s32.totalorder %s18, 3
      %p165 = por %p163, %p164
      %p166 = scmp.ne.s32.totalorder %s155, %s156
      %p167 = scmp.eq.s32.totalorder %s18, 0
      %p168 = por %p166, %p167
      %p169 = scmp.ne.s32.totalorder %s155, %s156
      %p170 = scmp.eq.s32.totalorder %s19, 3
      %p171 = por %p169, %p170
      %p173 = scmp.ne.s32.totalorder %s156, %s172
      %p174 = scmp.eq.s32.totalorder %s19, 0
      %p175 = por %p173, %p174
      %s176 = ssub.s32 %s20, %s32
      %p177 = scmp.eq.s32.totalorder %s176, 0
      %s179 = sadd.s32 %s178, 1
      %s180 = scalar_select %p177, %s178, %s179
      %p183 = pneg %p177
      %p184 = scmp.eq.s32.totalorder %s13, 3
      %p185 = por %p183, %p184
      %p186 = scmp.ne.s32.totalorder %s178, %s181
      %p187 = scmp.eq.s32.totalorder %s13, 0
      %p188 = por %p186, %p187
      %p189 = scmp.ne.s32.totalorder %s178, %s181
      %p190 = scmp.eq.s32.totalorder %s18, 3
      %p191 = por %p189, %p190
      %p192 = scmp.ne.s32.totalorder %s181, %s182
      %p193 = scmp.eq.s32.totalorder %s18, 0
      %p194 = por %p192, %p193
      %p195 = scmp.ne.s32.totalorder %s181, %s182
      %p196 = scmp.eq.s32.totalorder %s19, 3
      %p197 = por %p195, %p196
      %p199 = scmp.ne.s32.totalorder %s182, %s198
      %p200 = scmp.eq.s32.totalorder %s19, 0
      %p201 = por %p199, %p200
      %p202 = scmp.le.s32.totalorder 1, %s13
      %p203 = scmp.lt.s32.totalorder %s13, 5
      %p204 = pnand %p202, %p203
      %p205 = pneg %p204
      // Predicated region
      $region9: #{ppm.2} parent=5 // pred_check
        _
      $region10: #{ppm.2} parent=5 // pred_check_branch
        %207 = sbr.rel (%p204) target = $region12
      $region11: #{ppm.2} parent=5 // pred_region
        %s208 = ssub.s32 %s13, 1
        // Predicated region
        $region13: #{ppm.2} parent=11 // pred_check
          %p209 = pneg %p100
        $region14: #{ppm.2} parent=11 // pred_check_branch
          %211 = sbr.rel (%p209) target = $region16
        $region15: #{ppm.2} parent=11 // pred_region
          _
        $region16: #{ppm.2} parent=11 // pred_fallthru
          _
        // Predicated region
        $region17: #{ppm.2} parent=11 // pred_check
          %p212 = pneg %p121
        $region18: #{ppm.2} parent=11 // pred_check_branch
          %214 = sbr.rel (%p212) target = $region20
        $region19: #{ppm.2} parent=11 // pred_region
          _
        $region20: #{ppm.2} parent=11 // pred_fallthru
          _
        // Predicated region
        $region21: #{ppm.2} parent=11 // pred_check
          %p215 = pneg %p142
        $region22: #{ppm.2} parent=11 // pred_check_branch
          %217 = sbr.rel (%p215) target = $region24
        $region23: #{ppm.2} parent=11 // pred_region
          _
        $region24: #{ppm.2} parent=11 // pred_fallthru
          _
      $region12: #{ppm.2} parent=5 // pred_fallthru
        _
      %p218 = scmp.lt.s32.totalorder %s13, 4
      // Predicated region
      $region25: #{ppm.2} parent=5 // pred_check
        %p219 = pneg %p218
      $region26: #{ppm.2} parent=5 // pred_check_branch
        %221 = sbr.rel (%p219) target = $region28
      $region27: #{ppm.2} parent=5 // pred_region
        // Predicated region
        $region29: #{ppm.2} parent=27 // pred_check
          %p222 = pneg %p47
        $region30: #{ppm.2} parent=27 // pred_check_branch
          %224 = sbr.rel (%p222) target = $region32
        $region31: #{ppm.2} parent=27 // pred_region
          %s225 = smul.u32 16, %s21
          %p226 = scmp.lt.s32.totalorder %s20, 1
          %s227 = scalar_select %p226, %s20, 1
          %p228 = scmp.lt.s32.totalorder %s225, 31
          %s229 = scalar_select %p228, %s225, 31
          %s230 = smul.addr %s227, 32
          %s231 = sadd.s32 %s229, %s230
          %s232 = smul.addr %s231, 4
          %s233 = scalar_lea.vmem %s0, %s232
          %s234 = smul.u32 16, %s21
        $region32: #{ppm.2} parent=27 // pred_fallthru
          _
        // Predicated region
        $region33: #{ppm.2} parent=27 // pred_check
          %p235 = pneg %p73
        $region34: #{ppm.2} parent=27 // pred_check_branch
          %237 = sbr.rel (%p235) target = $region36
        $region35: #{ppm.2} parent=27 // pred_region
          %s238 = sand.u32 %s63, 1
          %s239 = sand.u32 %s63, 1
          %s240 = smul.addr %s239, 28
          %s241 = scalar_lea.vmem [#allocation3], %s240
          %s242 = smul.addr %s21, 4
          %s243 = scalar_lea.vmem %s1, %s242
          // Predicated region
          $region37: #{ppm.2} parent=35 // pred_check
            _
          $region38: #{ppm.2} parent=35 // pred_check_branch
            %245 = sbr.rel (0) target = $region40
          $region39: #{ppm.2} parent=35 // pred_region
            // Predicated region
            $region41: #{ppm.2} parent=39 // pred_check
              _
            $region42: #{ppm.2} parent=39 // pred_check_branch
              %247 = sbr.rel target = $region44
            $region43: #{ppm.2} parent=39 // pred_region
              // Predicated region
              $region56: #{ppm.2} parent=43 // pred_check
                _
              $region57: #{ppm.2} parent=43 // pred_check_branch
                %274 = sbr.rel (0) target = $region59
              $region58: #{ppm.2} parent=43 // pred_region
                loop: start=0, step=1, limit=1
                $region60: #{ppm.2} parent=58 // loop_pre_header
                  _
                $region61: #{ppm.2} parent=58 // loop_header
                  %s276 = sphi 0, %s280
                  %p277 = scmp.ge.s32.totalorder %s276, 1
                  %s281 = sphi %s243, %s243
                  %s282 = sphi %s241, %s241
                $region62: #{ppm.2} parent=58 // loop_header_branch
                  %279 = sbr.rel (%p277) target = $region66
                $region63: #{ppm.2} parent=58 // loop_body
                  _
                $region64: #{ppm.2} parent=58 // loop_footer
                  %s280 = sadd.s32 1, %s276
                $region65: #{ppm.2} parent=58 // loop_footer_branch
                  %275 = sbr.rel target = $region61
                $region66: #{ppm.2} parent=58 // loop_exit
                  _
                loop: start=0, step=1, limit=1
                $region67: #{ppm.2} parent=58 // loop_pre_header
                  _
                $region68: #{ppm.2} parent=58 // loop_header
                  %s285 = sphi 0, %s289
                  %p286 = scmp.ge.s32.totalorder %s285, 1
                  %s290 = sphi %s243, %s243
                  %s291 = sphi %s241, %s241
                $region69: #{ppm.2} parent=58 // loop_header_branch
                  %288 = sbr.rel (%p286) target = $region73
                $region70: #{ppm.2} parent=58 // loop_body
                  %v292 = vld [vmem:[%s290] sm:$0xf]
                  %293 = vst [vmem:[%s291] sm:$0xf] %v292
                  %v294 = vld [vmem:[%s290 + $0x8] sm:$0xf]
                  %295 = vst [vmem:[%s291 + $0x4] sm:$0xf] %v294
                  %v296 = vld [vmem:[%s290 + $0x10] sm:$0xf]
                  %297 = vst [vmem:[%s291 + $0x8] sm:$0xf] %v296
                  %v298 = vld [vmem:[%s290 + $0x18] sm:$0xf]
                  %299 = vst [vmem:[%s291 + $0xc] sm:$0xf] %v298
                  %v300 = vld [vmem:[%s290 + $0x20] sm:$0xf]
                  %301 = vst [vmem:[%s291 + $0x10] sm:$0xf] %v300
                  %v302 = vld [vmem:[%s290 + $0x28] sm:$0xf]
                  %303 = vst [vmem:[%s291 + $0x14] sm:$0xf] %v302
                  %v304 = vld [vmem:[%s290 + $0x30] sm:$0xf]
                  %305 = vst [vmem:[%s291 + $0x18] sm:$0xf] %v304
                $region71: #{ppm.2} parent=58 // loop_footer
                  %s289 = sadd.s32 1, %s285
                $region72: #{ppm.2} parent=58 // loop_footer_branch
                  %284 = sbr.rel target = $region68
                $region73: #{ppm.2} parent=58 // loop_exit
                  _
              $region59: #{ppm.2} parent=43 // pred_fallthru
                _
            $region44: #{ppm.2} parent=39 // pred_fallthru
              _
            // Predicated region
            $region45: #{ppm.2} parent=39 // pred_check
              _
            $region46: #{ppm.2} parent=39 // pred_check_branch
              %249 = sbr.rel (0) target = $region48
            $region47: #{ppm.2} parent=39 // pred_region
              loop: start=0, step=1, limit=1
              $region49: #{ppm.2} parent=47 // loop_pre_header
                _
              $region50: #{ppm.2} parent=47 // loop_header
                %s252 = sphi 0, %s256
                %p253 = scmp.ge.s32.totalorder %s252, 1
                %s257 = sphi %s243, %s243
                %s258 = sphi %s241, %s241
              $region51: #{ppm.2} parent=47 // loop_header_branch
                %255 = sbr.rel (%p253) target = $region55
              $region52: #{ppm.2} parent=47 // loop_body
                %v259 = vld [vmem:[%s257] sm:$0xf]
                %260 = vst [vmem:[%s258] sm:$0xf] %v259
                %v261 = vld [vmem:[%s257 + $0x8] sm:$0xf]
                %262 = vst [vmem:[%s258 + $0x4] sm:$0xf] %v261
                %v263 = vld [vmem:[%s257 + $0x10] sm:$0xf]
                %264 = vst [vmem:[%s258 + $0x8] sm:$0xf] %v263
                %v265 = vld [vmem:[%s257 + $0x18] sm:$0xf]
                %266 = vst [vmem:[%s258 + $0xc] sm:$0xf] %v265
                %v267 = vld [vmem:[%s257 + $0x20] sm:$0xf]
                %268 = vst [vmem:[%s258 + $0x10] sm:$0xf] %v267
                %v269 = vld [vmem:[%s257 + $0x28] sm:$0xf]
                %270 = vst [vmem:[%s258 + $0x14] sm:$0xf] %v269
                %v271 = vld [vmem:[%s257 + $0x30] sm:$0xf]
                %272 = vst [vmem:[%s258 + $0x18] sm:$0xf] %v271
              $region53: #{ppm.2} parent=47 // loop_footer
                %s256 = sadd.s32 1, %s252
              $region54: #{ppm.2} parent=47 // loop_footer_branch
                %251 = sbr.rel target = $region50
              $region55: #{ppm.2} parent=47 // loop_exit
                _
            $region48: #{ppm.2} parent=39 // pred_fallthru
              _
          $region40: #{ppm.2} parent=35 // pred_fallthru
            _
          %306 = vnop
        $region36: #{ppm.2} parent=27 // pred_fallthru
          _
      $region28: #{ppm.2} parent=5 // pred_fallthru
        _
      %p307 = scmp.le.s32.totalorder 1, %s13
      %p308 = scmp.lt.s32.totalorder %s13, 5
      %p309 = pnand %p307, %p308
      %p310 = pneg %p309
      // Predicated region
      $region74: #{ppm.2} parent=5 // pred_check
        _
      $region75: #{ppm.2} parent=5 // pred_check_branch
        %312 = sbr.rel (%p309) target = $region77
      $region76: #{ppm.2} parent=5 // pred_region
        %s313 = ssub.s32 %s13, 1
        %s314 = sand.u32 %s66, 1
        %s315 = sand.u32 %s66, 1
        %s316 = smul.addr %s315, 28
        %s317 = scalar_lea.vmem [#allocation3], %s316
        // Predicated region
        $region78: #{ppm.2} parent=76 // pred_check
          %p318 = pneg %p79
        $region79: #{ppm.2} parent=76 // pred_check_branch
          %320 = sbr.rel (%p318) target = $region81
        $region80: #{ppm.2} parent=76 // pred_region
          _
        $region81: #{ppm.2} parent=76 // pred_fallthru
          _
        %s321 = smul.u32 16, %s23
        %p322 = scmp.lt.s32.totalorder %s22, 1
        %s323 = scalar_select %p322, %s22, 1
        %p324 = scmp.lt.s32.totalorder %s321, 31
        %s325 = scalar_select %p324, %s321, 31
        %s326 = smul.addr %s323, 32
        %s327 = sadd.s32 %s325, %s326
        %s328 = smul.addr %s327, 4
        %s329 = scalar_lea.vmem %s0, %s328
        %p330 = pneg %p53
        %p331 = pneg %p50
        %s332 = sand.u32 %s66, 1
        %s333 = sand.u32 %s66, 1
        %s334 = smul.addr %s333, 28
        %s335 = scalar_lea.vmem [#allocation3], %s334
        %p336 = pneg %p79
        %p337 = pneg %p76
        %p338 = pneg %p100
        %p339 = pneg %p97
        %p340 = pneg %p121
        %p341 = pneg %p118
        %p342 = pneg %p142
        %p343 = pneg %p139
        %p344 = pneg %p168
        %p345 = pneg %p165
        %p346 = scmp.lt.s32.totalorder %s22, 1
        %s347 = scalar_select %p346, %s22, 1
        %s348 = smul.addr %s347, 7
        %s349 = smul.addr %s348, 8
        %s350 = scalar_lea.vmem %s5, %s349
        %p351 = pneg %p194
        %p352 = pneg %p191
        %p353 = scmp.lt.s32.totalorder %s22, 1
        %s354 = scalar_select %p353, %s22, 1
        %s355 = smul.addr %s354, 7
        %s356 = smul.addr %s355, 8
        %s357 = scalar_lea.vmem %s6, %s356
        %s358 = smul.u32 16, %s23
        %p359 = scmp.lt.s32.totalorder %s22, 1
        %s360 = scalar_select %p359, %s22, 1
        %p361 = scmp.lt.s32.totalorder %s358, 31
        %s362 = scalar_select %p361, %s358, 31
        %s363 = smul.addr %s360, 32
        %s364 = sadd.s32 %s362, %s363
        %s365 = smul.addr %s364, 4
        %s366 = scalar_lea.vmem %s0, %s365
        %s367 = smul.u32 16, %s23
        %p368 = scmp.lt.s32.totalorder %s22, 1
        %s369 = scalar_select %p368, %s22, 1
        %s370 = smul.addr %s369, 7
        %s371 = smul.addr %s370, 8
        %s372 = scalar_lea.vmem %s5, %s371
        %p373 = scmp.lt.s32.totalorder %s22, 1
        %s374 = scalar_select %p373, %s22, 1
        %s375 = smul.addr %s374, 7
        %s376 = smul.addr %s375, 8
        %s377 = scalar_lea.vmem %s6, %s376
        %p379 = scmp.eq.s32.totalorder %s23, 0
        // Predicated region
        $region82: #{ppm.2} parent=76 // pred_check
          %p380 = pneg %p379
        $region83: #{ppm.2} parent=76 // pred_check_branch
          %382 = sbr.rel (%p380) target = $region85
        $region84: #{ppm.2} parent=76 // pred_region
          %vm383 = vcmask 130048
          %384 = vst.msk [vmem:[#allocation2] sm:$0xff] %vm383, 0.0
          %385 = vst.msk [vmem:[#allocation2 + $0x8] sm:$0xff] %vm383, 0.0
          %386 = vst.msk [vmem:[#allocation2 + $0x10] sm:$0xff] %vm383, 0.0
          %387 = vst.msk [vmem:[#allocation2 + $0x18] sm:$0xff] %vm383, 0.0
          %388 = vst.msk [vmem:[#allocation2 + $0x20] sm:$0xff] %vm383, 0.0
          %389 = vst.msk [vmem:[#allocation2 + $0x28] sm:$0xff] %vm383, 0.0
          %vm390 = vcmask 123904
          %391 = vst.msk [vmem:[#allocation2 + $0x30] sm:$0x3] %vm390, 0.0
        $region85: #{ppm.2} parent=76 // pred_fallthru
          _
        %v392 = vld [vmem:[#allocation2] sm:$0xff]
        %v393 = vld [vmem:[#allocation2 + $0x8] sm:$0xff]
        %v394 = vld [vmem:[#allocation2 + $0x10] sm:$0xff]
        %v395 = vld [vmem:[#allocation2 + $0x18] sm:$0xff]
        %v396 = vld [vmem:[#allocation2 + $0x20] sm:$0xff]
        %v397 = vld [vmem:[#allocation2 + $0x28] sm:$0xff]
        %v398 = vld [vmem:[#allocation2 + $0x30] sm:$0x3]
        %v399 = vld [vmem:[%s317] sm:$0xf]
        %v400 = vld [vmem:[%s317 + $0x4] sm:$0xf]
        %v401 = vld [vmem:[%s317 + $0x8] sm:$0xf]
        %v402 = vld [vmem:[%s317 + $0xc] sm:$0xf]
        %v403 = vld [vmem:[%s317 + $0x10] sm:$0xf]
        %v404 = vld [vmem:[%s317 + $0x14] sm:$0xf]
        %v405 = vld [vmem:[%s317 + $0x18] sm:$0x1]
        %v406 = vld [vmem:[%s366] sm:$0xf]
        %v407 = vld [vmem:[%s366 + $0x4] sm:$0xf]
        %v408 = vld [vmem:[%s366 + $0x8] sm:$0xf]
        %v409 = vld [vmem:[%s366 + $0xc] sm:$0xf]
        %v410 = vld [vmem:[%s366 + $0x10] sm:$0xf]
        %v411 = vld [vmem:[%s366 + $0x14] sm:$0xf]
        %v412 = vld [vmem:[%s366 + $0x18] sm:$0xf]
        %v413 = vld [vmem:[%s366 + $0x1c] sm:$0xf]
        %v414 = vld [vmem:[%s366 + $0x20] sm:$0xf]
        %v415 = vld [vmem:[%s366 + $0x24] sm:$0xf]
        %v416 = vld [vmem:[%s366 + $0x28] sm:$0xf]
        %v417 = vld [vmem:[%s366 + $0x2c] sm:$0xf]
        %v418 = vld [vmem:[%s366 + $0x30] sm:$0xf]
        %v419 = vld [vmem:[%s366 + $0x34] sm:$0xf]
        %v420 = vld [vmem:[%s366 + $0x38] sm:$0xf]
        %v421 = vld [vmem:[%s366 + $0x3c] sm:$0xf]
        %v429 = vunpack.c.l.b16 %v399
        %v430 = vunpack.c.l.b16 %v400
        %v431 = vunpack.c.l.b16 %v401
        %v432 = vunpack.c.l.b16 %v402
        %v433 = vunpack.c.l.b16 %v403
        %v434 = vunpack.c.l.b16 %v404
        %v435 = vunpack.c.l.b16 %v405
        %v436 = vpack.c.b16 %v430, %v429
        %v437 = vpack.c.b16 %v432, %v431
        %v438 = vpack.c.b16 %v434, %v433
        %v439 = vpack.c.b16 %v435, %v435
        %v460 = vunpack.c.l.b16 %v406
        %v461 = vunpack.c.l.b16 %v407
        %v462 = vunpack.c.l.b16 %v408
        %v463 = vunpack.c.l.b16 %v409
        %v464 = vunpack.c.l.b16 %v410
        %v465 = vunpack.c.l.b16 %v411
        %v466 = vunpack.c.l.b16 %v412
        %v467 = vunpack.c.l.b16 %v413
        %v468 = vunpack.c.l.b16 %v414
        %v469 = vunpack.c.l.b16 %v415
        %v470 = vunpack.c.l.b16 %v416
        %v471 = vunpack.c.l.b16 %v417
        %v472 = vunpack.c.l.b16 %v418
        %v473 = vunpack.c.l.b16 %v419
        %v474 = vunpack.c.l.b16 %v420
        %v475 = vunpack.c.l.b16 %v421
        %v476 = vpack.c.b16 %v461, %v460
        %v477 = vpack.c.b16 %v463, %v462
        %v478 = vpack.c.b16 %v465, %v464
        %v479 = vpack.c.b16 %v467, %v466
        %v480 = vpack.c.b16 %v469, %v468
        %v481 = vpack.c.b16 %v471, %v470
        %v482 = vpack.c.b16 %v473, %v472
        %v483 = vpack.c.b16 %v475, %v474
        %492 = vmatprep.subr.bf16.mxu0 0
        %493 = vmatpush1.bf16.msra.mxu0 %v476
        %494 = vmatprep.subr.bf16.mxu0 0
        %495 = vmatpush1.bf16.msra.mxu0 %v477
        %496 = vmatprep.subr.bf16.mxu0 0
        %497 = vmatpush1.bf16.msra.mxu0 %v478
        %498 = vmatprep.subr.bf16.mxu0 0
        %499 = vmatpush1.bf16.msra.mxu0 %v479
        %500 = vmatprep.subr.bf16.mxu0 0
        %501 = vmatpush1.bf16.msra.mxu0 %v480
        %502 = vmatprep.subr.bf16.mxu0 0
        %503 = vmatpush1.bf16.msra.mxu0 %v481
        %504 = vmatprep.subr.bf16.mxu0 0
        %505 = vmatpush1.bf16.msra.mxu0 %v482
        %506 = vmatprep.subr.bf16.mxu0 0
        %507 = vmatpush1.bf16.msra.mxu0 %v483
        %508 = vmatprep.subr.bf16.mxu0 0
        %509 = vmatpush1.bf16.msra.mxu0 0
        %510 = vmatprep.subr.bf16.mxu0 0
        %511 = vmatpush1.bf16.msra.mxu0 0
        %512 = vmatprep.subr.bf16.mxu0 0
        %513 = vmatpush1.bf16.msra.mxu0 0
        %514 = vmatprep.subr.bf16.mxu0 0
        %515 = vmatpush1.bf16.msra.mxu0 0
        %516 = vmatprep.subr.bf16.mxu0 0
        %517 = vmatpush1.bf16.msra.mxu0 0
        %518 = vmatprep.subr.bf16.mxu0 0
        %519 = vmatpush1.bf16.msra.mxu0 0
        %520 = vmatprep.subr.bf16.mxu0 0
        %521 = vmatpush1.bf16.msra.mxu0 0
        %522 = vmatprep.subr.bf16.mxu0 0
        %523 = vmatpush1.bf16.msra.mxu0 0
        %524 = vmatprep.mubr.bf16.mxu0 0
        %525 = vmatmul.mubr.bf16.gmra.mrb[0].mxu0 %v436
        %v526 = vpop.f32.mrb[0].mxu0
        %v527 = vadd.f32 0.0, %v526
        %v528 = vpop.f32.mrb[0].mxu0
        %v529 = vpop.f32.mrb[0].mxu0
        %v530 = vadd.f32 0.0, %v529
        %v531 = vpop.f32.mrb[0].mxu0
        %532 = vmatprep.mubr.bf16.mxu0 0
        %533 = vmatmul.mubr.bf16.gmra.mrb[0].mxu0 %v437
        %v534 = vpop.f32.mrb[0].mxu0
        %v535 = vadd.f32 0.0, %v534
        %v536 = vpop.f32.mrb[0].mxu0
        %v537 = vpop.f32.mrb[0].mxu0
        %v538 = vadd.f32 0.0, %v537
        %v539 = vpop.f32.mrb[0].mxu0
        %540 = vmatprep.mubr.bf16.mxu0 0
        %541 = vmatmul.mubr.bf16.gmra.mrb[0].mxu0 %v438
        %v542 = vpop.f32.mrb[0].mxu0
        %v543 = vadd.f32 0.0, %v542
        %v544 = vpop.f32.mrb[0].mxu0
        %v545 = vpop.f32.mrb[0].mxu0
        %v546 = vadd.f32 0.0, %v545
        %v547 = vpop.f32.mrb[0].mxu0
        %548 = vmatprep.mubr.bf16.mxu0 0
        %549 = vmatmul.mubr.bf16.gmra.mrb[0].mxu0 %v439
        %v550 = vpop.f32.mrb[0].mxu0
        %v551 = vadd.f32 0.0, %v550
        %v552 = vpop.f32.mrb[0].mxu0
        %v553 = vpop.f32.mrb[0].mxu0
        %v554 = vpop.f32.mrb[0].mxu0
        %555 = vdwg.mxu0
        %v556 = vadd.f32 %v392, %v527
        %v557 = vadd.f32 %v393, %v530
        %v558 = vadd.f32 %v394, %v535
        %v559 = vadd.f32 %v395, %v538
        %v560 = vadd.f32 %v396, %v543
        %v561 = vadd.f32 %v397, %v546
        %v562 = vadd.f32 %v398, %v551
        %vm563 = vcmask 130048
        %564 = vst.msk [vmem:[#allocation2] sm:$0xff] %vm563, %v556
        %565 = vst.msk [vmem:[#allocation2 + $0x8] sm:$0xff] %vm563, %v557
        %566 = vst.msk [vmem:[#allocation2 + $0x10] sm:$0xff] %vm563, %v558
        %567 = vst.msk [vmem:[#allocation2 + $0x18] sm:$0xff] %vm563, %v559
        %568 = vst.msk [vmem:[#allocation2 + $0x20] sm:$0xff] %vm563, %v560
        %569 = vst.msk [vmem:[#allocation2 + $0x28] sm:$0xff] %vm563, %v561
        %vm570 = vcmask 123904
        %571 = vst.msk [vmem:[#allocation2 + $0x30] sm:$0x3] %vm570, %v562
        %p572 = scmp.eq.s32.totalorder %s23, 1
        // Predicated region
        $region86: #{ppm.2} parent=76 // pred_check
          %p573 = pneg %p572
        $region87: #{ppm.2} parent=76 // pred_check_branch
          %575 = sbr.rel (%p573) target = $region89
        $region88: #{ppm.2} parent=76 // pred_region
          %v576 = vld [vmem:[#allocation2] sm:$0xff]
          %v577 = vld [vmem:[#allocation2 + $0x8] sm:$0xff]
          %v578 = vld [vmem:[#allocation2 + $0x10] sm:$0xff]
          %v579 = vld [vmem:[#allocation2 + $0x18] sm:$0xff]
          %v580 = vld [vmem:[#allocation2 + $0x20] sm:$0xff]
          %v581 = vld [vmem:[#allocation2 + $0x28] sm:$0xff]
          %v582 = vld [vmem:[#allocation2 + $0x30] sm:$0x3]
          %v583 = vpack.c.bf16 %v577, %v576
          %v584 = vpack.c.bf16 %v579, %v578
          %v585 = vpack.c.bf16 %v581, %v580
          %v586 = vpack.c.bf16 %v582, %v582
          %v587 = vld [vmem:[%s2] sm:$0xf]
          %v588 = vld [vmem:[%s2 + $0x4] sm:$0xf]
          %v589 = vld [vmem:[%s2 + $0x8] sm:$0xf]
          %v590 = vld [vmem:[%s2 + $0xc] sm:$0xf]
          %v591 = vld [vmem:[%s2 + $0x10] sm:$0xf]
          %v592 = vld [vmem:[%s2 + $0x14] sm:$0xf]
          %v593 = vld [vmem:[%s2 + $0x18] sm:$0xf]
          %v594 = vld [vmem:[%s2 + $0x1c] sm:$0xf]
          %v595 = vld [vmem:[%s3] sm:$0xf]
          %v596 = vld [vmem:[%s4] sm:$0xf]
          %v597 = vld [vmem:[%s4 + $0x4] sm:$0xf]
          %v600 = vunpack.c.l.b16 %v587
          %v601 = vunpack.c.l.b16 %v588
          %v602 = vpack.c.b16 %v601, %v600
          %v605 = vsel %vm563, %v583, 0
          %607 = vmatprep.subr.bf16.mxu0 0
          %608 = vmatpush1.bf16.msra.mxu0 %v602
          %609 = vmatprep.subr.bf16.mxu0 0
          %610 = vmatpush1.bf16.msra.mxu0 0
          %611 = vmatprep.subr.bf16.mxu0 0
          %612 = vmatpush1.bf16.msra.mxu0 0
          %613 = vmatprep.subr.bf16.mxu0 0
          %614 = vmatpush1.bf16.msra.mxu0 0
          %615 = vmatprep.subr.bf16.mxu0 0
          %616 = vmatpush1.bf16.msra.mxu0 0
          %617 = vmatprep.subr.bf16.mxu0 0
          %618 = vmatpush1.bf16.msra.mxu0 0
          %619 = vmatprep.subr.bf16.mxu0 0
          %620 = vmatpush1.bf16.msra.mxu0 0
          %621 = vmatprep.subr.bf16.mxu0 0
          %622 = vmatpush1.bf16.msra.mxu0 0
          %623 = vmatprep.subr.bf16.mxu0 0
          %624 = vmatpush1.bf16.msra.mxu0 0
          %625 = vmatprep.subr.bf16.mxu0 0
          %626 = vmatpush1.bf16.msra.mxu0 0
          %627 = vmatprep.subr.bf16.mxu0 0
          %628 = vmatpush1.bf16.msra.mxu0 0
          %629 = vmatprep.subr.bf16.mxu0 0
          %630 = vmatpush1.bf16.msra.mxu0 0
          %631 = vmatprep.subr.bf16.mxu0 0
          %632 = vmatpush1.bf16.msra.mxu0 0
          %633 = vmatprep.subr.bf16.mxu0 0
          %634 = vmatpush1.bf16.msra.mxu0 0
          %635 = vmatprep.subr.bf16.mxu0 0
          %636 = vmatpush1.bf16.msra.mxu0 0
          %637 = vmatprep.subr.bf16.mxu0 0
          %638 = vmatpush1.bf16.msra.mxu0 0
          %639 = vmatprep.mubr.bf16.mxu0 0
          %640 = vmatmul.mubr.bf16.gmra.mrb[0].mxu0 %v605
          %v641 = vpop.f32.mrb[0].mxu0
          %v642 = vadd.f32 %v595, %v641
          %v643 = vpop.f32.mrb[0].mxu0
          %v644 = vpop.f32.mrb[0].mxu0
          %v645 = vpop.f32.mrb[0].mxu0
          %646 = vdwg.mxu0
          %v647 = vmax.f32 %v642, 0.0
          %v648 = vpack.c.bf16 %v647, %v647
          %vm649 = vcmask 31744
          %v651 = vsel %vm649, %v648, 0
          %vm653 = vcmask 1041408
          %v655 = vsel %vm653, %v596, 0
          %657 = vmatprep.subr.bf16.mxu0 0
          %658 = vmatpush1.bf16.msra.mxu0 %v655
          %659 = vmatprep.subr.bf16.mxu0 0
          %660 = vmatpush1.bf16.msra.mxu0 0
          %661 = vmatprep.subr.bf16.mxu0 0
          %662 = vmatpush1.bf16.msra.mxu0 0
          %663 = vmatprep.subr.bf16.mxu0 0
          %664 = vmatpush1.bf16.msra.mxu0 0
          %665 = vmatprep.subr.bf16.mxu0 0
          %666 = vmatpush1.bf16.msra.mxu0 0
          %667 = vmatprep.subr.bf16.mxu0 0
          %668 = vmatpush1.bf16.msra.mxu0 0
          %669 = vmatprep.subr.bf16.mxu0 0
          %670 = vmatpush1.bf16.msra.mxu0 0
          %671 = vmatprep.subr.bf16.mxu0 0
          %672 = vmatpush1.bf16.msra.mxu0 0
          %673 = vmatprep.subr.bf16.mxu0 0
          %674 = vmatpush1.bf16.msra.mxu0 0
          %675 = vmatprep.subr.bf16.mxu0 0
          %676 = vmatpush1.bf16.msra.mxu0 0
          %677 = vmatprep.subr.bf16.mxu0 0
          %678 = vmatpush1.bf16.msra.mxu0 0
          %679 = vmatprep.subr.bf16.mxu0 0
          %680 = vmatpush1.bf16.msra.mxu0 0
          %681 = vmatprep.subr.bf16.mxu0 0
          %682 = vmatpush1.bf16.msra.mxu0 0
          %683 = vmatprep.subr.bf16.mxu0 0
          %684 = vmatpush1.bf16.msra.mxu0 0
          %685 = vmatprep.subr.bf16.mxu0 0
          %686 = vmatpush1.bf16.msra.mxu0 0
          %687 = vmatprep.subr.bf16.mxu0 0
          %688 = vmatpush1.bf16.msra.mxu0 0
          %689 = vmatprep.mubr.bf16.mxu0 0
          %690 = vmatmul.mubr.bf16.gmra.mrb[0].mxu0 %v651
          %v691 = vpop.f32.mrb[0].mxu0
          %v692 = vadd.f32 0.0, %v691
          %v693 = vpop.f32.mrb[0].mxu0
          %v694 = vpop.f32.mrb[0].mxu0
          %v695 = vpop.f32.mrb[0].mxu0
          %696 = vdwg.mxu0
          %v697 = vlaneseq
          %v698 = vshrl.u32 %v697, 7
          %v699 = vsub.s32 1, %v698
          %v700 = vrot.slane %v595, %v699
          %v701 = vshrl.u32 %v583, 16
          %v703 = vshll.u32 %v583, 16
          %v705 = vrot.slane %v703, 1
          %v706 = vor.u32 %v701, %v705
          %v709 = vunpack.c.l.b16 %v589
          %v710 = vunpack.c.l.b16 %v590
          %v711 = vpack.c.b16 %v710, %v709
          %v714 = vsel %vm563, %v706, 0
          %716 = vmatprep.subr.bf16.mxu0 0
          %717 = vmatpush1.bf16.msra.mxu0 %v711
          %718 = vmatprep.subr.bf16.mxu0 0
          %719 = vmatpush1.bf16.msra.mxu0 0
          %720 = vmatprep.subr.bf16.mxu0 0
          %721 = vmatpush1.bf16.msra.mxu0 0
          %722 = vmatprep.subr.bf16.mxu0 0
          %723 = vmatpush1.bf16.msra.mxu0 0
          %724 = vmatprep.subr.bf16.mxu0 0
          %725 = vmatpush1.bf16.msra.mxu0 0
          %726 = vmatprep.subr.bf16.mxu0 0
          %727 = vmatpush1.bf16.msra.mxu0 0
          %728 = vmatprep.subr.bf16.mxu0 0
          %729 = vmatpush1.bf16.msra.mxu0 0
          %730 = vmatprep.subr.bf16.mxu0 0
          %731 = vmatpush1.bf16.msra.mxu0 0
          %732 = vmatprep.subr.bf16.mxu0 0
          %733 = vmatpush1.bf16.msra.mxu0 0
          %734 = vmatprep.subr.bf16.mxu0 0
          %735 = vmatpush1.bf16.msra.mxu0 0
          %736 = vmatprep.subr.bf16.mxu0 0
          %737 = vmatpush1.bf16.msra.mxu0 0
          %738 = vmatprep.subr.bf16.mxu0 0
          %739 = vmatpush1.bf16.msra.mxu0 0
          %740 = vmatprep.subr.bf16.mxu0 0
          %741 = vmatpush1.bf16.msra.mxu0 0
          %742 = vmatprep.subr.bf16.mxu0 0
          %743 = vmatpush1.bf16.msra.mxu0 0
          %744 = vmatprep.subr.bf16.mxu0 0
          %745 = vmatpush1.bf16.msra.mxu0 0
          %746 = vmatprep.subr.bf16.mxu0 0
          %747 = vmatpush1.bf16.msra.mxu0 0
          %748 = vmatprep.mubr.bf16.mxu0 0
          %749 = vmatmul.mubr.bf16.gmra.mrb[0].mxu0 %v714
          %v750 = vpop.f32.mrb[0].mxu0
          %v751 = vadd.f32 %v700, %v750
          %v752 = vpop.f32.mrb[0].mxu0
          %v753 = vpop.f32.mrb[0].mxu0
          %v754 = vpop.f32.mrb[0].mxu0
          %755 = vdwg.mxu0
          %v756 = vmax.f32 %v751, 0.0
          %v757 = vpack.c.bf16 %v756, %v756
          %v759 = vunpack.c.l.b16 %v596
          %v760 = vpack.c.b16 %v759, %v759
          %v761 = vrot.slane %v760, 2
          %v763 = vsel %vm649, %v757, 0
          %v766 = vsel %vm653, %v761, 0
          %768 = vmatprep.subr.bf16.mxu0 0
          %769 = vmatpush1.bf16.msra.mxu0 %v766
          %770 = vmatprep.subr.bf16.mxu0 0
          %771 = vmatpush1.bf16.msra.mxu0 0
          %772 = vmatprep.subr.bf16.mxu0 0
          %773 = vmatpush1.bf16.msra.mxu0 0
          %774 = vmatprep.subr.bf16.mxu0 0
          %775 = vmatpush1.bf16.msra.mxu0 0
          %776 = vmatprep.subr.bf16.mxu0 0
          %777 = vmatpush1.bf16.msra.mxu0 0
          %778 = vmatprep.subr.bf16.mxu0 0
          %779 = vmatpush1.bf16.msra.mxu0 0
          %780 = vmatprep.subr.bf16.mxu0 0
          %781 = vmatpush1.bf16.msra.mxu0 0
          %782 = vmatprep.subr.bf16.mxu0 0
          %783 = vmatpush1.bf16.msra.mxu0 0
          %784 = vmatprep.subr.bf16.mxu0 0
          %785 = vmatpush1.bf16.msra.mxu0 0
          %786 = vmatprep.subr.bf16.mxu0 0
          %787 = vmatpush1.bf16.msra.mxu0 0
          %788 = vmatprep.subr.bf16.mxu0 0
          %789 = vmatpush1.bf16.msra.mxu0 0
          %790 = vmatprep.subr.bf16.mxu0 0
          %791 = vmatpush1.bf16.msra.mxu0 0
          %792 = vmatprep.subr.bf16.mxu0 0
          %793 = vmatpush1.bf16.msra.mxu0 0
          %794 = vmatprep.subr.bf16.mxu0 0
          %795 = vmatpush1.bf16.msra.mxu0 0
          %796 = vmatprep.subr.bf16.mxu0 0
          %797 = vmatpush1.bf16.msra.mxu0 0
          %798 = vmatprep.subr.bf16.mxu0 0
          %799 = vmatpush1.bf16.msra.mxu0 0
          %800 = vmatprep.mubr.bf16.mxu0 0
          %801 = vmatmul.mubr.bf16.gmra.mrb[0].mxu0 %v763
          %v802 = vpop.f32.mrb[0].mxu0
          %v803 = vadd.f32 0.0, %v802
          %v804 = vpop.f32.mrb[0].mxu0
          %v805 = vpop.f32.mrb[0].mxu0
          %v806 = vpop.f32.mrb[0].mxu0
          %807 = vdwg.mxu0
          %v808 = vlaneseq
          %v809 = vshrl.u32 %v808, 7
          %v810 = vsub.s32 2, %v809
          %v811 = vrot.slane %v595, %v810
          %v812 = vrot.slane %v701, 2
          %v813 = vrot.slane %v703, 3
          %v814 = vor.u32 %v812, %v813
          %v817 = vunpack.c.l.b16 %v591
          %v818 = vunpack.c.l.b16 %v592
          %v819 = vpack.c.b16 %v818, %v817
          %v822 = vsel %vm563, %v814, 0
          %824 = vmatprep.subr.bf16.mxu0 0
          %825 = vmatpush1.bf16.msra.mxu0 %v819
          %826 = vmatprep.subr.bf16.mxu0 0
          %827 = vmatpush1.bf16.msra.mxu0 0
          %828 = vmatprep.subr.bf16.mxu0 0
          %829 = vmatpush1.bf16.msra.mxu0 0
          %830 = vmatprep.subr.bf16.mxu0 0
          %831 = vmatpush1.bf16.msra.mxu0 0
          %832 = vmatprep.subr.bf16.mxu0 0
          %833 = vmatpush1.bf16.msra.mxu0 0
          %834 = vmatprep.subr.bf16.mxu0 0
          %835 = vmatpush1.bf16.msra.mxu0 0
          %836 = vmatprep.subr.bf16.mxu0 0
          %837 = vmatpush1.bf16.msra.mxu0 0
          %838 = vmatprep.subr.bf16.mxu0 0
          %839 = vmatpush1.bf16.msra.mxu0 0
          %840 = vmatprep.subr.bf16.mxu0 0
          %841 = vmatpush1.bf16.msra.mxu0 0
          %842 = vmatprep.subr.bf16.mxu0 0
          %843 = vmatpush1.bf16.msra.mxu0 0
          %844 = vmatprep.subr.bf16.mxu0 0
          %845 = vmatpush1.bf16.msra.mxu0 0
          %846 = vmatprep.subr.bf16.mxu0 0
          %847 = vmatpush1.bf16.msra.mxu0 0
          %848 = vmatprep.subr.bf16.mxu0 0
          %849 = vmatpush1.bf16.msra.mxu0 0
          %850 = vmatprep.subr.bf16.mxu0 0
          %851 = vmatpush1.bf16.msra.mxu0 0
          %852 = vmatprep.subr.bf16.mxu0 0
          %853 = vmatpush1.bf16.msra.mxu0 0
          %854 = vmatprep.subr.bf16.mxu0 0
          %855 = vmatpush1.bf16.msra.mxu0 0
          %856 = vmatprep.mubr.bf16.mxu0 0
          %857 = vmatmul.mubr.bf16.gmra.mrb[0].mxu0 %v822
          %v858 = vpop.f32.mrb[0].mxu0
          %v859 = vadd.f32 %v811, %v858
          %v860 = vpop.f32.mrb[0].mxu0
          %v861 = vpop.f32.mrb[0].mxu0
          %v862 = vadd.f32 %v811, %v861
          %v863 = vpop.f32.mrb[0].mxu0
          %864 = vdwg.mxu0
          %v865 = vmax.f32 %v859, 0.0
          %v866 = vmax.f32 %v862, 0.0
          %v867 = vpack.c.bf16 %v866, %v865
          %v869 = vsel %vm649, %v867, 0
          %v872 = vsel %vm653, %v597, 0
          %874 = vmatprep.subr.bf16.mxu0 0
          %875 = vmatpush1.bf16.msra.mxu0 %v872
          %876 = vmatprep.subr.bf16.mxu0 0
          %877 = vmatpush1.bf16.msra.mxu0 0
          %878 = vmatprep.subr.bf16.mxu0 0
          %879 = vmatpush1.bf16.msra.mxu0 0
          %880 = vmatprep.subr.bf16.mxu0 0
          %881 = vmatpush1.bf16.msra.mxu0 0
          %882 = vmatprep.subr.bf16.mxu0 0
          %883 = vmatpush1.bf16.msra.mxu0 0
          %884 = vmatprep.subr.bf16.mxu0 0
          %885 = vmatpush1.bf16.msra.mxu0 0
          %886 = vmatprep.subr.bf16.mxu0 0
          %887 = vmatpush1.bf16.msra.mxu0 0
          %888 = vmatprep.subr.bf16.mxu0 0
          %889 = vmatpush1.bf16.msra.mxu0 0
          %890 = vmatprep.subr.bf16.mxu0 0
          %891 = vmatpush1.bf16.msra.mxu0 0
          %892 = vmatprep.subr.bf16.mxu0 0
          %893 = vmatpush1.bf16.msra.mxu0 0
          %894 = vmatprep.subr.bf16.mxu0 0
          %895 = vmatpush1.bf16.msra.mxu0 0
          %896 = vmatprep.subr.bf16.mxu0 0
          %897 = vmatpush1.bf16.msra.mxu0 0
          %898 = vmatprep.subr.bf16.mxu0 0
          %899 = vmatpush1.bf16.msra.mxu0 0
          %900 = vmatprep.subr.bf16.mxu0 0
          %901 = vmatpush1.bf16.msra.mxu0 0
          %902 = vmatprep.subr.bf16.mxu0 0
          %903 = vmatpush1.bf16.msra.mxu0 0
          %904 = vmatprep.subr.bf16.mxu0 0
          %905 = vmatpush1.bf16.msra.mxu0 0
          %906 = vmatprep.mubr.bf16.mxu0 0
          %907 = vmatmul.mubr.bf16.gmra.mrb[0].mxu0 %v869
          %v908 = vpop.f32.mrb[0].mxu0
          %v909 = vadd.f32 0.0, %v908
          %v910 = vpop.f32.mrb[0].mxu0
          %v911 = vpop.f32.mrb[0].mxu0
          %v912 = vadd.f32 0.0, %v911
          %v913 = vpop.f32.mrb[0].mxu0
          %914 = vdwg.mxu0
          %v915 = vlaneseq
          %v916 = vshrl.u32 %v915, 7
          %v917 = vsub.s32 3, %v916
          %v918 = vrot.slane %v595, %v917
          %vm923 = vcmask 1040384
          %v924 = vrot.slane %v583, 7
          %v925 = vrot.slane %v584, 7
          %v926 = vsel %vm923, %v924, %v925
          %v927 = vrot.slane %v585, 7
          %v928 = vsel %vm923, %v925, %v927
          %v929 = vrot.slane %v586, 7
          %v930 = vsel %vm923, %v927, %v929
          %v933 = vunpack.c.l.b16 %v593
          %v934 = vunpack.c.l.b16 %v594
          %v935 = vpack.c.b16 %v934, %v933
          %v938 = vsel %vm563, %v926, 0
          %v941 = vsel %vm563, %v928, 0
          %v944 = vsel %vm563, %v930, 0
          %946 = vmatprep.subr.bf16.mxu0 0
          %947 = vmatpush1.bf16.msra.mxu0 %v935
          %948 = vmatprep.subr.bf16.mxu0 0
          %949 = vmatpush1.bf16.msra.mxu0 0
          %950 = vmatprep.subr.bf16.mxu0 0
          %951 = vmatpush1.bf16.msra.mxu0 0
          %952 = vmatprep.subr.bf16.mxu0 0
          %953 = vmatpush1.bf16.msra.mxu0 0
          %954 = vmatprep.subr.bf16.mxu0 0
          %955 = vmatpush1.bf16.msra.mxu0 0
          %956 = vmatprep.subr.bf16.mxu0 0
          %957 = vmatpush1.bf16.msra.mxu0 0
          %958 = vmatprep.subr.bf16.mxu0 0
          %959 = vmatpush1.bf16.msra.mxu0 0
          %960 = vmatprep.subr.bf16.mxu0 0
          %961 = vmatpush1.bf16.msra.mxu0 0
          %962 = vmatprep.subr.bf16.mxu0 0
          %963 = vmatpush1.bf16.msra.mxu0 0
          %964 = vmatprep.subr.bf16.mxu0 0
          %965 = vmatpush1.bf16.msra.mxu0 0
          %966 = vmatprep.subr.bf16.mxu0 0
          %967 = vmatpush1.bf16.msra.mxu0 0
          %968 = vmatprep.subr.bf16.mxu0 0
          %969 = vmatpush1.bf16.msra.mxu0 0
          %970 = vmatprep.subr.bf16.mxu0 0
          %971 = vmatpush1.bf16.msra.mxu0 0
          %972 = vmatprep.subr.bf16.mxu0 0
          %973 = vmatpush1.bf16.msra.mxu0 0
          %974 = vmatprep.subr.bf16.mxu0 0
          %975 = vmatpush1.bf16.msra.mxu0 0
          %976 = vmatprep.subr.bf16.mxu0 0
          %977 = vmatpush1.bf16.msra.mxu0 0
          %978 = vmatprep.mubr.bf16.mxu0 0
          %979 = vmatmul.mubr.bf16.gmra.mrb[0].mxu0 %v938
          %v980 = vpop.f32.mrb[0].mxu0
          %v981 = vadd.f32 %v918, %v980
          %v982 = vpop.f32.mrb[0].mxu0
          %v983 = vpop.f32.mrb[0].mxu0
          %v984 = vadd.f32 %v918, %v983
          %v985 = vpop.f32.mrb[0].mxu0
          %986 = vmatprep.mubr.bf16.mxu0 0
          %987 = vmatmul.mubr.bf16.gmra.mrb[0].mxu0 %v941
          %v988 = vpop.f32.mrb[0].mxu0
          %v989 = vadd.f32 %v918, %v988
          %v990 = vpop.f32.mrb[0].mxu0
          %v991 = vpop.f32.mrb[0].mxu0
          %v992 = vadd.f32 %v918, %v991
          %v993 = vpop.f32.mrb[0].mxu0
          %994 = vmatprep.mubr.bf16.mxu0 0
          %995 = vmatmul.mubr.bf16.gmra.mrb[0].mxu0 %v944
          %v996 = vpop.f32.mrb[0].mxu0
          %v997 = vadd.f32 %v918, %v996
          %v998 = vpop.f32.mrb[0].mxu0
          %v999 = vpop.f32.mrb[0].mxu0
          %v1000 = vpop.f32.mrb[0].mxu0
          %1001 = vdwg.mxu0
          %v1002 = vmax.f32 %v981, 0.0
          %v1003 = vmax.f32 %v984, 0.0
          %v1004 = vmax.f32 %v989, 0.0
          %v1005 = vmax.f32 %v992, 0.0
          %v1006 = vmax.f32 %v997, 0.0
          %v1007 = vpack.c.bf16 %v1003, %v1002
          %v1008 = vpack.c.bf16 %v1005, %v1004
          %v1009 = vpack.c.bf16 %v1006, %v1006
          %v1011 = vunpack.c.l.b16 %v597
          %v1012 = vpack.c.b16 %v1011, %v1011
          %v1013 = vrot.slane %v1012, 2
          %v1015 = vsel %vm649, %v1007, 0
          %v1018 = vsel %vm649, %v1008, 0
          %v1021 = vsel %vm649, %v1009, 0
          %v1024 = vsel %vm653, %v1013, 0
          %1026 = vmatprep.subr.bf16.mxu0 0
          %1027 = vmatpush1.bf16.msra.mxu0 %v1024
          %1028 = vmatprep.subr.bf16.mxu0 0
          %1029 = vmatpush1.bf16.msra.mxu0 0
          %1030 = vmatprep.subr.bf16.mxu0 0
          %1031 = vmatpush1.bf16.msra.mxu0 0
          %1032 = vmatprep.subr.bf16.mxu0 0
          %1033 = vmatpush1.bf16.msra.mxu0 0
          %1034 = vmatprep.subr.bf16.mxu0 0
          %1035 = vmatpush1.bf16.msra.mxu0 0
          %1036 = vmatprep.subr.bf16.mxu0 0
          %1037 = vmatpush1.bf16.msra.mxu0 0
          %1038 = vmatprep.subr.bf16.mxu0 0
          %1039 = vmatpush1.bf16.msra.mxu0 0
          %1040 = vmatprep.subr.bf16.mxu0 0
          %1041 = vmatpush1.bf16.msra.mxu0 0
          %1042 = vmatprep.subr.bf16.mxu0 0
          %1043 = vmatpush1.bf16.msra.mxu0 0
          %1044 = vmatprep.subr.bf16.mxu0 0
          %1045 = vmatpush1.bf16.msra.mxu0 0
          %1046 = vmatprep.subr.bf16.mxu0 0
          %1047 = vmatpush1.bf16.msra.mxu0 0
          %1048 = vmatprep.subr.bf16.mxu0 0
          %1049 = vmatpush1.bf16.msra.mxu0 0
          %1050 = vmatprep.subr.bf16.mxu0 0
          %1051 = vmatpush1.bf16.msra.mxu0 0
          %1052 = vmatprep.subr.bf16.mxu0 0
          %1053 = vmatpush1.bf16.msra.mxu0 0
          %1054 = vmatprep.subr.bf16.mxu0 0
          %1055 = vmatpush1.bf16.msra.mxu0 0
          %1056 = vmatprep.subr.bf16.mxu0 0
          %1057 = vmatpush1.bf16.msra.mxu0 0
          %1058 = vmatprep.mubr.bf16.mxu0 0
          %1059 = vmatmul.mubr.bf16.gmra.mrb[0].mxu0 %v1015
          %v1060 = vpop.f32.mrb[0].mxu0
          %v1061 = vadd.f32 0.0, %v1060
          %v1062 = vpop.f32.mrb[0].mxu0
          %v1063 = vpop.f32.mrb[0].mxu0
          %v1064 = vadd.f32 0.0, %v1063
          %v1065 = vpop.f32.mrb[0].mxu0
          %1066 = vmatprep.mubr.bf16.mxu0 0
          %1067 = vmatmul.mubr.bf16.gmra.mrb[0].mxu0 %v1018
          %v1068 = vpop.f32.mrb[0].mxu0
          %v1069 = vadd.f32 0.0, %v1068
          %v1070 = vpop.f32.mrb[0].mxu0
          %v1071 = vpop.f32.mrb[0].mxu0
          %v1072 = vadd.f32 0.0, %v1071
          %v1073 = vpop.f32.mrb[0].mxu0
          %1074 = vmatprep.mubr.bf16.mxu0 0
          %1075 = vmatmul.mubr.bf16.gmra.mrb[0].mxu0 %v1021
          %v1076 = vpop.f32.mrb[0].mxu0
          %v1077 = vadd.f32 0.0, %v1076
          %v1078 = vpop.f32.mrb[0].mxu0
          %v1079 = vpop.f32.mrb[0].mxu0
          %v1080 = vpop.f32.mrb[0].mxu0
          %1081 = vdwg.mxu0
          %v1083 = vrot.slane %v756, 7
          %vm1087 = vcmask 1044480
          %v1088 = vrot.slane %v865, 3
          %v1089 = vrot.slane %v866, 3
          %v1090 = vsel %vm1087, %v1088, %v1089
          %vm1098 = vcmask 1045504
          %v1099 = vrot.slane %v1002, 2
          %v1100 = vrot.slane %v1003, 2
          %v1101 = vsel %vm1098, %v1099, %v1100
          %v1102 = vrot.slane %v1004, 2
          %v1103 = vsel %vm1098, %v1100, %v1102
          %v1104 = vrot.slane %v1005, 2
          %v1105 = vsel %vm1098, %v1102, %v1104
          %v1106 = vrot.slane %v1006, 2
          %v1107 = vsel %vm1098, %v1104, %v1106
          %vm1114 = vcmask 1040384
          %v1115 = vsel %vm1114, %v647, %v1083
          %v1116 = vsel %vm1087, %v1115, %v1088
          %v1117 = vsel %vm1098, %v1090, %v1099
          %1118 = vst.msk [vmem:[%s372] sm:$0xff] %vm649, %v1116
          %1119 = vst.msk [vmem:[%s372 + $0x8] sm:$0xff] %vm649, %v1117
          %1120 = vst.msk [vmem:[%s372 + $0x10] sm:$0xff] %vm649, %v1101
          %1121 = vst.msk [vmem:[%s372 + $0x18] sm:$0xff] %vm649, %v1103
          %1122 = vst.msk [vmem:[%s372 + $0x20] sm:$0xff] %vm649, %v1105
          %1123 = vst.msk [vmem:[%s372 + $0x28] sm:$0xff] %vm649, %v1107
          %vm1124 = vcmask 25600
          %1125 = vst.msk [vmem:[%s372 + $0x30] sm:$0x3] %vm1124, %v1106
          %v1127 = vrot.slane %v803, 7
          %v1131 = vrot.slane %v909, 3
          %v1132 = vrot.slane %v912, 3
          %v1133 = vsel %vm1087, %v1131, %v1132
          %v1141 = vrot.slane %v1061, 2
          %v1142 = vrot.slane %v1064, 2
          %v1143 = vsel %vm1098, %v1141, %v1142
          %v1144 = vrot.slane %v1069, 2
          %v1145 = vsel %vm1098, %v1142, %v1144
          %v1146 = vrot.slane %v1072, 2
          %v1147 = vsel %vm1098, %v1144, %v1146
          %v1148 = vrot.slane %v1077, 2
          %v1149 = vsel %vm1098, %v1146, %v1148
          %v1156 = vsel %vm1114, %v692, %v1127
          %v1157 = vsel %vm1087, %v1156, %v1131
          %v1158 = vsel %vm1098, %v1133, %v1141
          %vm1159 = vcmask 64512
          %1160 = vst.msk [vmem:[%s377] sm:$0xff] %vm1159, %v1157
          %1161 = vst.msk [vmem:[%s377 + $0x8] sm:$0xff] %vm1159, %v1158
          %1162 = vst.msk [vmem:[%s377 + $0x10] sm:$0xff] %vm1159, %v1143
          %1163 = vst.msk [vmem:[%s377 + $0x18] sm:$0xff] %vm1159, %v1145
          %1164 = vst.msk [vmem:[%s377 + $0x20] sm:$0xff] %vm1159, %v1147
          %1165 = vst.msk [vmem:[%s377 + $0x28] sm:$0xff] %vm1159, %v1149
          %vm1166 = vcmask 58368
          %1167 = vst.msk [vmem:[%s377 + $0x30] sm:$0x3] %vm1166, %v1148
        $region89: #{ppm.2} parent=76 // pred_fallthru
          _
        %p1168 = scmp.lt.s32.totalorder %s22, 1
        %s1169 = scalar_select %p1168, %s22, 1
        %s1170 = smul.addr %s1169, 7
        %s1171 = smul.addr %s1170, 8
        %s1172 = scalar_lea.vmem %s5, %s1171
        %p1173 = scmp.lt.s32.totalorder %s22, 1
        %s1174 = scalar_select %p1173, %s22, 1
        %s1175 = smul.addr %s1174, 7
        %s1176 = smul.addr %s1175, 8
        %s1177 = scalar_lea.vmem %s6, %s1176
        // Predicated region
        $region90: #{ppm.2} parent=76 // pred_check
          %p1178 = pneg %p165
        $region91: #{ppm.2} parent=76 // pred_check_branch
          %1180 = sbr.rel (%p1178) target = $region93
        $region92: #{ppm.2} parent=76 // pred_region
          _
        $region93: #{ppm.2} parent=76 // pred_fallthru
          _
        // Predicated region
        $region94: #{ppm.2} parent=76 // pred_check
          %p1181 = pneg %p191
        $region95: #{ppm.2} parent=76 // pred_check_branch
          %1183 = sbr.rel (%p1181) target = $region97
        $region96: #{ppm.2} parent=76 // pred_region
          _
        $region97: #{ppm.2} parent=76 // pred_fallthru
          _
      $region77: #{ppm.2} parent=5 // pred_fallthru
        _
      %p1184 = scmp.le.s32.totalorder 2, %s13
      // Predicated region
      $region98: #{ppm.2} parent=5 // pred_check
        %p1185 = pneg %p1184
      $region99: #{ppm.2} parent=5 // pred_check_branch
        %1187 = sbr.rel (%p1185) target = $region101
      $region100: #{ppm.2} parent=5 // pred_region
        %s1188 = ssub.s32 %s13, 2
        // Predicated region
        $region102: #{ppm.2} parent=100 // pred_check
          %p1189 = pneg %p171
        $region103: #{ppm.2} parent=100 // pred_check_branch
          %1191 = sbr.rel (%p1189) target = $region105
        $region104: #{ppm.2} parent=100 // pred_region
          %p1192 = scmp.lt.s32.totalorder %s24, 1
          %s1193 = scalar_select %p1192, %s24, 1
          %s1194 = smul.addr %s1193, 7
          %s1195 = smul.addr %s1194, 8
          %s1196 = scalar_lea.vmem %s5, %s1195
        $region105: #{ppm.2} parent=100 // pred_fallthru
          _
        // Predicated region
        $region106: #{ppm.2} parent=100 // pred_check
          %p1197 = pneg %p197
        $region107: #{ppm.2} parent=100 // pred_check_branch
          %1199 = sbr.rel (%p1197) target = $region109
        $region108: #{ppm.2} parent=100 // pred_region
          %p1200 = scmp.lt.s32.totalorder %s24, 1
          %s1201 = scalar_select %p1200, %s24, 1
          %s1202 = smul.addr %s1201, 7
          %s1203 = smul.addr %s1202, 8
          %s1204 = scalar_lea.vmem %s6, %s1203
        $region109: #{ppm.2} parent=100 // pred_fallthru
          _
      $region101: #{ppm.2} parent=5 // pred_fallthru
        _
    $region6: #{ppm.2} parent=1 // loop_footer
      %s17 = sadd.s32 1, %s13
    $region7: #{ppm.2} parent=1 // loop_footer_branch
      %12 = sbr.rel target = $region3
    $region8: #{ppm.2} parent=1 // loop_exit
      _

</llo_original>
